<compile_context>
chip_gen: v7x
topology: tpu7x:2x2x1
jax: 0.10.0
libtpu: 0.0.40
codegen_flags: <defaults>
</compile_context>

<pallas_src>
import functools

import jax
import jax.numpy as jnp
from jax.experimental import pallas as pl
from jax.experimental.pallas import tpu as pltpu


TILE_M_MAX = 1024                     # rows per grid step
VMEM_LIMIT = 48 * 1024 * 1024         # safe scoped-VMEM budget incl. v7x (64 MiB)


def _round_up(x, m):
    return (x + m - 1) // m * m


def _choose_tile_m(M):
    """M-tile: multiple of 16; >=2 grid steps once M is big enough (so v7x's
    second TensorCore gets work on the 'parallel' axis); capped so the
    double-buffered operands stay well under v7x's 64 MiB VMEM."""
    Ma = _round_up(max(M, 16), 16)
    if Ma <= 256:                      # too small to split usefully
        return Ma
    half = _round_up((Ma + 1) // 2, 16)
    return min(TILE_M_MAX, half)


def _pad_rows(a, rows):
    return a if a.shape[0] == rows else jnp.pad(a, ((0, rows - a.shape[0]), (0, 0)))


def _pad_cols(a, cols):
    return a if a.shape[1] == cols else jnp.pad(a, ((0, 0), (0, cols - a.shape[1])))


# ----------------------------------------------------------------------------
# Pallas kernel 1: fused  (A @ W + b) -> [ReLU] -> (*scale + shift)
#   bss_ref rows: 0 = conv bias, 1 = BN scale, 2 = BN shift   (all f32)
# ----------------------------------------------------------------------------
def _conv_gemm_kernel(a_ref, w_ref, bss_ref, o_ref, *, apply_relu):
    y = jnp.dot(a_ref[...], w_ref[...], preferred_element_type=jnp.float32)
    y = y + bss_ref[0:1, :]                     # conv bias
    if apply_relu:
        y = jnp.maximum(y, 0.0)                 # nn.ReLU
    y = y * bss_ref[1:2, :] + bss_ref[2:3, :]   # BatchNorm2d (eval) affine
    o_ref[...] = y.astype(o_ref.dtype)          # bf16 store (f32 for final)


def _fused_conv_gemm(A, Wf, bss, *, relu, out_dtype):
    M, K = A.shape
    Cout = Wf.shape[1]
    Kp = _round_up(K, 16)                       # bf16 sublane-pair aligned K
    tile_m = _choose_tile_m(M)
    Mp = _round_up(M, tile_m)

    A = _pad_cols(_pad_rows(A, Mp), Kp).astype(jnp.bfloat16)   # bf16 MXU feed
    Wf = _pad_rows(Wf, Kp).astype(jnp.bfloat16)

    out = pl.pallas_call(
        functools.partial(_conv_gemm_kernel, apply_relu=relu),
        out_shape=jax.ShapeDtypeStruct((Mp, Cout), out_dtype),
        grid_spec=pl.GridSpec(
            grid=(Mp // tile_m,),
            in_specs=[
                pl.BlockSpec((tile_m, Kp), lambda i: (i, 0)),
                pl.BlockSpec((Kp, Cout), lambda i: (0, 0)),
                pl.BlockSpec((3, Cout), lambda i: (0, 0)),
            ],
            out_specs=pl.BlockSpec((tile_m, Cout), lambda i: (i, 0)),
        ),
        compiler_params=pltpu.CompilerParams(
            dimension_semantics=("parallel",),
            vmem_limit_bytes=VMEM_LIMIT),
    )(A, Wf, bss.astype(jnp.float32))
    return out[:M]


# ----------------------------------------------------------------------------
# Pallas kernel 2: fused residual Block
#   relu(A @ W1 + b1) @ W2 + b2 -> relu -> + input   (intermediate stays on-chip)
# ----------------------------------------------------------------------------
def _block_kernel(a_ref, w1_ref, b1_ref, w2_ref, b2_ref, res_ref, o_ref):
    y = jnp.dot(a_ref[...], w1_ref[...], preferred_element_type=jnp.float32)
    y = jnp.maximum(y + b1_ref[...], 0.0)                     # conv3x3 + ReLU
    y = jnp.dot(y.astype(jnp.bfloat16), w2_ref[...],
                preferred_element_type=jnp.float32)
    y = jnp.maximum(y + b2_ref[...], 0.0)                     # conv1x1 + ReLU
    o_ref[...] = (res_ref[...].astype(jnp.float32) + y).astype(o_ref.dtype)


def block_fused(x, w1, b1, w2, b2):
    # x: (N, H, W, C) bf16; w1: (3,3,C,Cexp); w2: (1,1,Cexp,C)
    x = x.astype(jnp.bfloat16)
    N, H, W, C = x.shape
    Cexp = w1.shape[3]
    A, (N, Ho, Wo) = _im2col(x, 3, 1, 1)        # built in bf16
    M, K1 = A.shape
    K1p = _round_up(K1, 16)
    tile_m = _choose_tile_m(M)
    Mp = _round_up(M, tile_m)

    A = _pad_cols(_pad_rows(A, Mp), K1p)
    W1f = _pad_rows(w1.reshape(K1, Cexp), K1p).astype(jnp.bfloat16)
    W2f = w2.reshape(Cexp, C).astype(jnp.bfloat16)
    res = _pad_rows(x.reshape(M, C), Mp)        # bf16 residual

    out = pl.pallas_call(
        _block_kernel,
        out_shape=jax.ShapeDtypeStruct((Mp, C), jnp.bfloat16),
        grid_spec=pl.GridSpec(
            grid=(Mp // tile_m,),
            in_specs=[
                pl.BlockSpec((tile_m, K1p), lambda i: (i, 0)),
                pl.BlockSpec((K1p, Cexp), lambda i: (0, 0)),
                pl.BlockSpec((1, Cexp), lambda i: (0, 0)),
                pl.BlockSpec((Cexp, C), lambda i: (0, 0)),
                pl.BlockSpec((1, C), lambda i: (0, 0)),
                pl.BlockSpec((tile_m, C), lambda i: (i, 0)),
            ],
            out_specs=pl.BlockSpec((tile_m, C), lambda i: (i, 0)),
        ),
        compiler_params=pltpu.CompilerParams(
            dimension_semantics=("parallel",),
            vmem_limit_bytes=VMEM_LIMIT),
    )(A, W1f, b1.reshape(1, Cexp).astype(jnp.float32), W2f,
      b2.reshape(1, C).astype(jnp.float32), res)
    return out[:M].reshape(N, Ho, Wo, C)


# ----------------------------------------------------------------------------
# Pallas kernel 3: whole merged-head chain fused (valid when head spatial = 1x1,
# where a 3x3/pad-1 conv reduces exactly to its centre tap).  All intermediates
# stay in VMEM/vregs; the only HBM-facing output is the final (N, 5) tensor.
# ----------------------------------------------------------------------------
def _head_chain_kernel(*refs, n_mid):
    x_ref = refs[0]
    o_ref = refs[-1]
    y = x_ref[...]                                          # (N, C) bf16
    idx = 1
    for _ in range(n_mid):
        w_ref, bss_ref = refs[idx], refs[idx + 1]
        idx += 2
        z = jnp.dot(y, w_ref[...], preferred_element_type=jnp.float32)
        z = jnp.maximum(z + bss_ref[0:1, :], 0.0)           # conv bias + ReLU
        z = z * bss_ref[1:2, :] + bss_ref[2:3, :]           # BN affine
        y = z.astype(jnp.bfloat16)
    wf_ref, bf_ref = refs[idx], refs[idx + 1]
    z = jnp.dot(y, wf_ref[...], preferred_element_type=jnp.float32)
    o_ref[...] = (z + bf_ref[0:1, :]).astype(o_ref.dtype)


def head_chain_fused(x, merged_heads):
    N, H, W, C = x.shape
    assert H == 1 and W == 1, "fused head chain requires 1x1 spatial"
    n_mid = len(merged_heads) - 1
    Xf = x.reshape(N, C).astype(jnp.bfloat16)

    args = [Xf]
    in_specs = [pl.BlockSpec((N, C), lambda i: (0, 0))]
    for (w, b, s, sh) in merged_heads[:-1]:
        cin, cout = w.shape[2], w.shape[3]
        args.append(w[1, 1].astype(jnp.bfloat16))           # centre tap (cin,cout)
        args.append(jnp.stack([b, s, sh]).astype(jnp.float32))
        in_specs.append(pl.BlockSpec((cin, cout), lambda i: (0, 0)))
        in_specs.append(pl.BlockSpec((3, cout), lambda i: (0, 0)))
    wf, bf = merged_heads[-1]
    cin, cout = wf.shape[2], wf.shape[3]
    args.append(wf[1, 1].astype(jnp.bfloat16))
    args.append(bf.reshape(1, cout).astype(jnp.float32))
    in_specs.append(pl.BlockSpec((cin, cout), lambda i: (0, 0)))
    in_specs.append(pl.BlockSpec((1, cout), lambda i: (0, 0)))

    out = pl.pallas_call(
        functools.partial(_head_chain_kernel, n_mid=n_mid),
        out_shape=jax.ShapeDtypeStruct((N, cout), jnp.float32),
        grid_spec=pl.GridSpec(
            grid=(1,),
            in_specs=in_specs,
            out_specs=pl.BlockSpec((N, cout), lambda i: (0, 0)),
        ),
        compiler_params=pltpu.CompilerParams(
            dimension_semantics=("arbitrary",),
            vmem_limit_bytes=VMEM_LIMIT),
    )(*args)
    return out.reshape(N, 1, 1, cout)


# ----------------------------------------------------------------------------
# JAX glue: im2col (bf16) + fused conv wrapper
# ----------------------------------------------------------------------------
def _im2col(x, k, stride, pad):
    # x: (N, H, W, Cin) -> (N*Ho*Wo, k*k*Cin), patch order (kh, kw, c)
    N, H, W, C = x.shape
    xp = jnp.pad(x, ((0, 0), (pad, pad), (pad, pad), (0, 0)))
    Ho = (H + 2 * pad - k) // stride + 1
    Wo = (W + 2 * pad - k) // stride + 1
    cols = []
    for kh in range(k):
        for kw in range(k):
            cols.append(xp[:, kh:kh + stride * Ho:stride,
                           kw:kw + stride * Wo:stride, :])
    patches = jnp.concatenate(cols, axis=-1)  # (N, Ho, Wo, k*k*C)
    return patches.reshape(N * Ho * Wo, k * k * C), (N, Ho, Wo)


def conv2d_fused(x, w, b, *, stride, pad, relu, scale=None, shift=None,
                 out_dtype=jnp.bfloat16):
    # x: (N, H, W, Cin) ; w: (k, k, Cin, Cout) ; b: (Cout,)
    k = w.shape[0]
    Cin, Cout = w.shape[2], w.shape[3]
    x = x.astype(jnp.bfloat16)                       # im2col buffer in bf16
    if k == 1 and stride == 1 and pad == 0:          # 1x1 conv fast path
        N, H, W, _ = x.shape
        A, shape = x.reshape(N * H * W, Cin), (N, H, W)
    else:
        A, shape = _im2col(x, k, stride, pad)
    N, Ho, Wo = shape
    Wf = w.reshape(k * k * Cin, Cout)
    if scale is None:
        scale = jnp.ones((Cout,), jnp.float32)
    if shift is None:
        shift = jnp.zeros((Cout,), jnp.float32)
    bss = jnp.stack([b.astype(jnp.float32), scale.astype(jnp.float32),
                     shift.astype(jnp.float32)])     # (3, Cout)
    out = _fused_conv_gemm(A, Wf, bss, relu=relu, out_dtype=out_dtype)
    return out.reshape(N, Ho, Wo, Cout)


# ----------------------------------------------------------------------------
# Parameter construction (deterministic, synthetic)
# ----------------------------------------------------------------------------
def _make_conv(key, k, cin, cout):
    kw, kb = jax.random.split(key)
    # matches rHnet.init_weights(): std = sqrt(2 / (k*k*cout))
    w = jax.random.normal(kw, (k, k, cin, cout), jnp.float32) \
        * (2.0 / (k * k * cout)) ** 0.5
    b = 0.01 * jax.random.normal(kb, (cout,), jnp.float32)
    return w, b


def _make_bn(key, c, eps=1e-5):
    k1, k2, k3, k4 = jax.random.split(key, 4)
    gamma = 1.0 + 0.1 * jax.random.normal(k1, (c,), jnp.float32)
    beta = 0.1 * jax.random.normal(k2, (c,), jnp.float32)
    mean = 0.1 * jax.random.normal(k3, (c,), jnp.float32)
    var = jnp.abs(1.0 + 0.1 * jax.random.normal(k4, (c,), jnp.float32))
    scale = gamma / jnp.sqrt(var + eps)
    shift = beta - mean * scale
    return scale, shift


def _block_diag_conv(ws):
    # ws: list of (k, k, cin_i, cout_i) -> (k, k, sum(cin), sum(cout)) block-diag
    k = ws[0].shape[0]
    cin_tot = sum(w.shape[2] for w in ws)
    cout_tot = sum(w.shape[3] for w in ws)
    out = jnp.zeros((k, k, cin_tot, cout_tot), jnp.float32)
    ci = co = 0
    for w in ws:
        out = out.at[:, :, ci:ci + w.shape[2], co:co + w.shape[3]].set(w)
        ci += w.shape[2]
        co += w.shape[3]
    return out


def init_rhnet(key, depths, stem_dims, dims, in_channels, class_dims, expand):
    keys = iter(jax.random.split(key, 256))
    # stem
    stem = []
    stem_dimsx = [in_channels] + stem_dims
    for i in range(len(stem_dimsx) - 1):
        w, b = _make_conv(next(keys), 3, stem_dimsx[i], stem_dimsx[i + 1])
        s, sh = _make_bn(next(keys), stem_dimsx[i + 1])
        stem.append((w, b, s, sh))
    # body
    body = []
    dimsx = [stem_dims[-1]] + dims
    for i in range(len(depths)):
        blocks = []
        for _ in range(depths[i]):
            w1, b1 = _make_conv(next(keys), 3, dimsx[i], dimsx[i] * expand)
            w2, b2 = _make_conv(next(keys), 1, dimsx[i] * expand, dimsx[i])
            blocks.append((w1, b1, w2, b2))
        wd, bd = _make_conv(next(keys), 3, dimsx[i], dimsx[i + 1])
        s, sh = _make_bn(next(keys), dimsx[i + 1])
        body.append((blocks, (wd, bd, s, sh)))

    # heads: build per-head params (head1->1ch, head2->2ch, head3->2ch), then
    # merge into one chain (concat / block-diagonal weights) so the three heads
    # run as a single sequence of kernels reading x once.  Exact numerics.
    class_dimsx = [dims[-1]] + class_dims
    per_head = []
    for out_ch in (1, 2, 2):
        layers = []
        for i in range(len(class_dimsx) - 1):
            w, b = _make_conv(next(keys), 3, class_dimsx[i], class_dimsx[i + 1])
            s, sh = _make_bn(next(keys), class_dimsx[i + 1])
            layers.append((w, b, s, sh))
        wf, bf = _make_conv(next(keys), 3, class_dimsx[-1], out_ch)
        layers.append((wf, bf))
        per_head.append(layers)

    merged_heads = []
    n_mid = len(class_dimsx) - 1
    for li in range(n_mid):
        ws = [per_head[h][li][0] for h in range(3)]
        bs = [per_head[h][li][1] for h in range(3)]
        ss = [per_head[h][li][2] for h in range(3)]
        shs = [per_head[h][li][3] for h in range(3)]
        if li == 0:
            w = jnp.concatenate(ws, axis=3)       # all heads read the same x
        else:
            w = _block_diag_conv(ws)              # each head sees only its slice
        merged_heads.append((w, jnp.concatenate(bs),
                             jnp.concatenate(ss), jnp.concatenate(shs)))
    wfs = [per_head[h][-1][0] for h in range(3)]
    bfs = [per_head[h][-1][1] for h in range(3)]
    merged_heads.append((_block_diag_conv(wfs), jnp.concatenate(bfs)))

    return stem, body, merged_heads


# ----------------------------------------------------------------------------
# Forward pass
# ----------------------------------------------------------------------------
def rhnet_forward(params, x_nchw):
    stem, body, merged_heads = params
    x = jnp.transpose(x_nchw, (0, 2, 3, 1)).astype(jnp.bfloat16)  # NCHW -> NHWC

    # stem: (Conv3x3 s2 -> ReLU -> BN) x len(stem_dims)
    for (w, b, s, sh) in stem:
        x = conv2d_fused(x, w, b, stride=2, pad=1, relu=True, scale=s, shift=sh)

    # body: [Block x depth] -> Conv3x3 s2 -> ReLU -> BN
    for blocks, (wd, bd, s, sh) in body:
        for (w1, b1, w2, b2) in blocks:
            x = block_fused(x, w1, b1, w2, b2)       # one fused kernel / block
        x = conv2d_fused(x, wd, bd, stride=2, pad=1, relu=True,
                         scale=s, shift=sh)

    # merged heads: channel concat (head1 | head2 | head3) produced directly
    N, Hh, Wh, _ = x.shape
    if Hh == 1 and Wh == 1:
        h = head_chain_fused(x, merged_heads)        # ONE pallas_call for all heads
    else:
        # TODO(synk): general fused (implicit-GEMM) head chain for spatial > 1.
        h = x
        for (w, b, s, sh) in merged_heads[:-1]:
            h = conv2d_fused(h, w, b, stride=1, pad=1, relu=True,
                             scale=s, shift=sh)
        wf, bf = merged_heads[-1]
        h = conv2d_fused(h, wf, bf, stride=1, pad=1, relu=False,
                         out_dtype=jnp.float32)

    return jnp.transpose(h.astype(jnp.float32), (0, 3, 1, 2))   # back to NCHW


# ----------------------------------------------------------------------------
if __name__ == "__main__":
    # Small config consistent with the module structure.
    depths = [1, 1]
    stem_dims = [8, 8]
    dims = [8, 16]
    in_channels = 3
    class_dims = [8, 8]
    expand = 2

    key = jax.random.PRNGKey(0)
    kp, kx = jax.random.split(key)
    params = init_rhnet(kp, depths, stem_dims, dims, in_channels,
                        class_dims, expand)

    x = jax.random.normal(kx, (2, in_channels, 16, 16), jnp.float32)  # NCHW

    fwd = jax.jit(functools.partial(rhnet_forward, params))
    out = fwd(x)
    jax.block_until_ready(out)

    # sanity: concat of 1 + 2 + 2 output channels, spatial 16 / 2^4 = 1
    assert out.shape == (2, 5, 1, 1), out.shape
    assert bool(jnp.all(jnp.isfinite(out)))
    print("KERNEL_OK")
</pallas_src>

<mosaic_0001>
module attributes {stable_mosaic.version = 11 : i64} {
  func.func @_conv_gemm_kernel(%arg0: i32, %arg1: memref<128x32xbf16, #tpu.memory_space<vmem>>, %arg2: memref<32x8xbf16, #tpu.memory_space<vmem>>, %arg3: memref<3x8xf32, #tpu.memory_space<vmem>>, %arg4: memref<128x8xbf16, #tpu.memory_space<vmem>>) attributes {dimension_semantics = [#tpu.dimension_semantics<parallel>], iteration_bounds = array<i64: 1>, scalar_prefetch = 0 : i64, scratch_operands = 0 : i64, tpu.core_type = #tpu.core_type<tc>, window_params = [{transform_indices = @transform_0, window_bounds = array<i64: 128, 32>}, {pipeline_mode = #tpu.pipeline_mode<synchronous>, transform_indices = @transform_1, window_bounds = array<i64: 32, 8>}, {pipeline_mode = #tpu.pipeline_mode<synchronous>, transform_indices = @transform_2, window_bounds = array<i64: 3, 8>}, {transform_indices = @transform_3, window_bounds = array<i64: 128, 8>}]} {
    %c0 = arith.constant 0 : index
    %c0_0 = arith.constant 0 : index
    %0 = vector.load %arg1[%c0, %c0_0] : memref<128x32xbf16, #tpu.memory_space<vmem>>, vector<128x32xbf16>
    %c0_1 = arith.constant 0 : index
    %c0_2 = arith.constant 0 : index
    %1 = vector.load %arg2[%c0_1, %c0_2] : memref<32x8xbf16, #tpu.memory_space<vmem>>, vector<32x8xbf16>
    %cst = arith.constant dense<0.000000e+00> : vector<128x8xf32>
    %2 = tpu.matmul %0, %1, %cst {dimension_numbers = #tpu.dot_dimension_numbers<[1], [0], [0], [1], [0, 0, 1, 1], [], []>} : vector<128x32xbf16>, vector<32x8xbf16>, vector<128x8xf32> -> vector<128x8xf32>
    %c0_3 = arith.constant 0 : index
    %c0_4 = arith.constant 0 : index
    %3 = vector.load %arg3[%c0_3, %c0_4] : memref<3x8xf32, #tpu.memory_space<vmem>>, vector<1x8xf32>
    %4 = vector.broadcast %3 : vector<1x8xf32> to vector<128x8xf32>
    %5 = arith.addf %2, %4 : vector<128x8xf32>
    %cst_5 = arith.constant 0.000000e+00 : f32
    %6 = vector.broadcast %cst_5 : f32 to vector<128x8xf32>
    %7 = arith.maximumf %5, %6 : vector<128x8xf32>
    %c1 = arith.constant 1 : index
    %c0_6 = arith.constant 0 : index
    %8 = vector.load %arg3[%c1, %c0_6] : memref<3x8xf32, #tpu.memory_space<vmem>>, vector<1x8xf32>
    %9 = vector.broadcast %8 : vector<1x8xf32> to vector<128x8xf32>
    %10 = arith.mulf %7, %9 : vector<128x8xf32>
    %c2 = arith.constant 2 : index
    %c0_7 = arith.constant 0 : index
    %11 = vector.load %arg3[%c2, %c0_7] : memref<3x8xf32, #tpu.memory_space<vmem>>, vector<1x8xf32>
    %12 = vector.broadcast %11 : vector<1x8xf32> to vector<128x8xf32>
    %13 = arith.addf %10, %12 : vector<128x8xf32>
    %14 = arith.truncf %13 : vector<128x8xf32> to vector<128x8xbf16>
    %c0_8 = arith.constant 0 : index
    %c0_9 = arith.constant 0 : index
    %15 = vector.load %arg4[%c0_8, %c0_9] : memref<128x8xbf16, #tpu.memory_space<vmem>>, vector<128x8xbf16>
    tpu.vector_store %arg4[%c0_8, %c0_9], %14 {strides = array<i32>} : memref<128x8xbf16, #tpu.memory_space<vmem>>, vector<128x8xbf16>,
    return
  }
  func.func @transform_0(%arg0: i32) -> (i32, i32) {
    %c0_i32 = arith.constant 0 : i32
    %c0_i32_0 = arith.constant 0 : i32
    return %arg0, %c0_i32 : i32, i32
  }
  func.func @transform_1(%arg0: i32) -> (i32, i32) {
    %c0_i32 = arith.constant 0 : i32
    %c0_i32_0 = arith.constant 0 : i32
    %c0_i32_1 = arith.constant 0 : i32
    return %c0_i32, %c0_i32_0 : i32, i32
  }
  func.func @transform_2(%arg0: i32) -> (i32, i32) {
    %c0_i32 = arith.constant 0 : i32
    %c0_i32_0 = arith.constant 0 : i32
    %c0_i32_1 = arith.constant 0 : i32
    return %c0_i32, %c0_i32_0 : i32, i32
  }
  func.func @transform_3(%arg0: i32) -> (i32, i32) {
    %c0_i32 = arith.constant 0 : i32
    %c0_i32_0 = arith.constant 0 : i32
    return %arg0, %c0_i32 : i32, i32
  }
}

module attributes {stable_mosaic.version = 11 : i64} {
  func.func @_conv_gemm_kernel(%arg0: i32, %arg1: memref<32x80xbf16, #tpu.memory_space<vmem>>, %arg2: memref<80x8xbf16, #tpu.memory_space<vmem>>, %arg3: memref<3x8xf32, #tpu.memory_space<vmem>>, %arg4: memref<32x8xbf16, #tpu.memory_space<vmem>>) attributes {dimension_semantics = [#tpu.dimension_semantics<parallel>], iteration_bounds = array<i64: 1>, scalar_prefetch = 0 : i64, scratch_operands = 0 : i64, tpu.core_type = #tpu.core_type<tc>, window_params = [{transform_indices = @transform_0, window_bounds = array<i64: 32, 80>}, {pipeline_mode = #tpu.pipeline_mode<synchronous>, transform_indices = @transform_1, window_bounds = array<i64: 80, 8>}, {pipeline_mode = #tpu.pipeline_mode<synchronous>, transform_indices = @transform_2, window_bounds = array<i64: 3, 8>}, {transform_indices = @transform_3, window_bounds = array<i64: 32, 8>}]} {
    %c0 = arith.constant 0 : index
    %c0_0 = arith.constant 0 : index
    %0 = vector.load %arg1[%c0, %c0_0] : memref<32x80xbf16, #tpu.memory_space<vmem>>, vector<32x80xbf16>
    %c0_1 = arith.constant 0 : index
    %c0_2 = arith.constant 0 : index
    %1 = vector.load %arg2[%c0_1, %c0_2] : memref<80x8xbf16, #tpu.memory_space<vmem>>, vector<80x8xbf16>
    %cst = arith.constant dense<0.000000e+00> : vector<32x8xf32>
    %2 = tpu.matmul %0, %1, %cst {dimension_numbers = #tpu.dot_dimension_numbers<[1], [0], [0], [1], [0, 0, 1, 1], [], []>} : vector<32x80xbf16>, vector<80x8xbf16>, vector<32x8xf32> -> vector<32x8xf32>
    %c0_3 = arith.constant 0 : index
    %c0_4 = arith.constant 0 : index
    %3 = vector.load %arg3[%c0_3, %c0_4] : memref<3x8xf32, #tpu.memory_space<vmem>>, vector<1x8xf32>
    %4 = vector.broadcast %3 : vector<1x8xf32> to vector<32x8xf32>
    %5 = arith.addf %2, %4 : vector<32x8xf32>
    %cst_5 = arith.constant 0.000000e+00 : f32
    %6 = vector.broadcast %cst_5 : f32 to vector<32x8xf32>
    %7 = arith.maximumf %5, %6 : vector<32x8xf32>
    %c1 = arith.constant 1 : index
    %c0_6 = arith.constant 0 : index
    %8 = vector.load %arg3[%c1, %c0_6] : memref<3x8xf32, #tpu.memory_space<vmem>>, vector<1x8xf32>
    %9 = vector.broadcast %8 : vector<1x8xf32> to vector<32x8xf32>
    %10 = arith.mulf %7, %9 : vector<32x8xf32>
    %c2 = arith.constant 2 : index
    %c0_7 = arith.constant 0 : index
    %11 = vector.load %arg3[%c2, %c0_7] : memref<3x8xf32, #tpu.memory_space<vmem>>, vector<1x8xf32>
    %12 = vector.broadcast %11 : vector<1x8xf32> to vector<32x8xf32>
    %13 = arith.addf %10, %12 : vector<32x8xf32>
    %14 = arith.truncf %13 : vector<32x8xf32> to vector<32x8xbf16>
    %c0_8 = arith.constant 0 : index
    %c0_9 = arith.constant 0 : index
    %15 = vector.load %arg4[%c0_8, %c0_9] : memref<32x8xbf16, #tpu.memory_space<vmem>>, vector<32x8xbf16>
    tpu.vector_store %arg4[%c0_8, %c0_9], %14 {strides = array<i32>} : memref<32x8xbf16, #tpu.memory_space<vmem>>, vector<32x8xbf16>,
    return
  }
  func.func @transform_0(%arg0: i32) -> (i32, i32) {
    %c0_i32 = arith.constant 0 : i32
    %c0_i32_0 = arith.constant 0 : i32
    return %arg0, %c0_i32 : i32, i32
  }
  func.func @transform_1(%arg0: i32) -> (i32, i32) {
    %c0_i32 = arith.constant 0 : i32
    %c0_i32_0 = arith.constant 0 : i32
    %c0_i32_1 = arith.constant 0 : i32
    return %c0_i32, %c0_i32_0 : i32, i32
  }
  func.func @transform_2(%arg0: i32) -> (i32, i32) {
    %c0_i32 = arith.constant 0 : i32
    %c0_i32_0 = arith.constant 0 : i32
    %c0_i32_1 = arith.constant 0 : i32
    return %c0_i32, %c0_i32_0 : i32, i32
  }
  func.func @transform_3(%arg0: i32) -> (i32, i32) {
    %c0_i32 = arith.constant 0 : i32
    %c0_i32_0 = arith.constant 0 : i32
    return %arg0, %c0_i32 : i32, i32
  }
}

module attributes {stable_mosaic.version = 11 : i64} {
  func.func @_block_kernel(%arg0: i32, %arg1: memref<32x80xbf16, #tpu.memory_space<vmem>>, %arg2: memref<80x16xbf16, #tpu.memory_space<vmem>>, %arg3: memref<1x16xf32, #tpu.memory_space<vmem>>, %arg4: memref<16x8xbf16, #tpu.memory_space<vmem>>, %arg5: memref<1x8xf32, #tpu.memory_space<vmem>>, %arg6: memref<32x8xbf16, #tpu.memory_space<vmem>>, %arg7: memref<32x8xbf16, #tpu.memory_space<vmem>>) attributes {dimension_semantics = [#tpu.dimension_semantics<parallel>], iteration_bounds = array<i64: 1>, scalar_prefetch = 0 : i64, scratch_operands = 0 : i64, tpu.core_type = #tpu.core_type<tc>, window_params = [{transform_indices = @transform_0, window_bounds = array<i64: 32, 80>}, {pipeline_mode = #tpu.pipeline_mode<synchronous>, transform_indices = @transform_1, window_bounds = array<i64: 80, 16>}, {pipeline_mode = #tpu.pipeline_mode<synchronous>, transform_indices = @transform_2, window_bounds = array<i64: 1, 16>}, {pipeline_mode = #tpu.pipeline_mode<synchronous>, transform_indices = @transform_3, window_bounds = array<i64: 16, 8>}, {pipeline_mode = #tpu.pipeline_mode<synchronous>, transform_indices = @transform_4, window_bounds = array<i64: 1, 8>}, {transform_indices = @transform_5, window_bounds = array<i64: 32, 8>}, {transform_indices = @transform_6, window_bounds = array<i64: 32, 8>}]} {
    %c0 = arith.constant 0 : index
    %c0_0 = arith.constant 0 : index
    %0 = vector.load %arg1[%c0, %c0_0] : memref<32x80xbf16, #tpu.memory_space<vmem>>, vector<32x80xbf16>
    %c0_1 = arith.constant 0 : index
    %c0_2 = arith.constant 0 : index
    %1 = vector.load %arg2[%c0_1, %c0_2] : memref<80x16xbf16, #tpu.memory_space<vmem>>, vector<80x16xbf16>
    %cst = arith.constant dense<0.000000e+00> : vector<32x16xf32>
    %2 = tpu.matmul %0, %1, %cst {dimension_numbers = #tpu.dot_dimension_numbers<[1], [0], [0], [1], [0, 0, 1, 1], [], []>} : vector<32x80xbf16>, vector<80x16xbf16>, vector<32x16xf32> -> vector<32x16xf32>
    %c0_3 = arith.constant 0 : index
    %c0_4 = arith.constant 0 : index
    %3 = vector.load %arg3[%c0_3, %c0_4] : memref<1x16xf32, #tpu.memory_space<vmem>>, vector<1x16xf32>
    %4 = vector.broadcast %3 : vector<1x16xf32> to vector<32x16xf32>
    %5 = arith.addf %2, %4 : vector<32x16xf32>
    %cst_5 = arith.constant 0.000000e+00 : f32
    %6 = vector.broadcast %cst_5 : f32 to vector<32x16xf32>
    %7 = arith.maximumf %5, %6 : vector<32x16xf32>
    %8 = arith.truncf %7 : vector<32x16xf32> to vector<32x16xbf16>
    %c0_6 = arith.constant 0 : index
    %c0_7 = arith.constant 0 : index
    %9 = vector.load %arg4[%c0_6, %c0_7] : memref<16x8xbf16, #tpu.memory_space<vmem>>, vector<16x8xbf16>
    %cst_8 = arith.constant dense<0.000000e+00> : vector<32x8xf32>
    %10 = tpu.matmul %8, %9, %cst_8 {dimension_numbers = #tpu.dot_dimension_numbers<[1], [0], [0], [1], [0, 0, 1, 1], [], []>} : vector<32x16xbf16>, vector<16x8xbf16>, vector<32x8xf32> -> vector<32x8xf32>
    %c0_9 = arith.constant 0 : index
    %c0_10 = arith.constant 0 : index
    %11 = vector.load %arg5[%c0_9, %c0_10] : memref<1x8xf32, #tpu.memory_space<vmem>>, vector<1x8xf32>
    %12 = vector.broadcast %11 : vector<1x8xf32> to vector<32x8xf32>
    %13 = arith.addf %10, %12 : vector<32x8xf32>
    %cst_11 = arith.constant 0.000000e+00 : f32
    %14 = vector.broadcast %cst_11 : f32 to vector<32x8xf32>
    %15 = arith.maximumf %13, %14 : vector<32x8xf32>
    %c0_12 = arith.constant 0 : index
    %c0_13 = arith.constant 0 : index
    %16 = vector.load %arg6[%c0_12, %c0_13] : memref<32x8xbf16, #tpu.memory_space<vmem>>, vector<32x8xbf16>
    %17 = arith.extf %16 : vector<32x8xbf16> to vector<32x8xf32>
    %18 = arith.addf %17, %15 : vector<32x8xf32>
    %19 = arith.truncf %18 : vector<32x8xf32> to vector<32x8xbf16>
    %c0_14 = arith.constant 0 : index
    %c0_15 = arith.constant 0 : index
    %20 = vector.load %arg7[%c0_14, %c0_15] : memref<32x8xbf16, #tpu.memory_space<vmem>>, vector<32x8xbf16>
    tpu.vector_store %arg7[%c0_14, %c0_15], %19 {strides = array<i32>} : memref<32x8xbf16, #tpu.memory_space<vmem>>, vector<32x8xbf16>,
    return
  }
  func.func @transform_0(%arg0: i32) -> (i32, i32) {
    %c0_i32 = arith.constant 0 : i32
    %c0_i32_0 = arith.constant 0 : i32
    return %arg0, %c0_i32 : i32, i32
  }
  func.func @transform_1(%arg0: i32) -> (i32, i32) {
    %c0_i32 = arith.constant 0 : i32
    %c0_i32_0 = arith.constant 0 : i32
    %c0_i32_1 = arith.constant 0 : i32
    return %c0_i32, %c0_i32_0 : i32, i32
  }
  func.func @transform_2(%arg0: i32) -> (i32, i32) {
    %c0_i32 = arith.constant 0 : i32
    %c0_i32_0 = arith.constant 0 : i32
    %c0_i32_1 = arith.constant 0 : i32
    return %c0_i32, %c0_i32_0 : i32, i32
  }
  func.func @transform_3(%arg0: i32) -> (i32, i32) {
    %c0_i32 = arith.constant 0 : i32
    %c0_i32_0 = arith.constant 0 : i32
    %c0_i32_1 = arith.constant 0 : i32
    return %c0_i32, %c0_i32_0 : i32, i32
  }
  func.func @transform_4(%arg0: i32) -> (i32, i32) {
    %c0_i32 = arith.constant 0 : i32
    %c0_i32_0 = arith.constant 0 : i32
    %c0_i32_1 = arith.constant 0 : i32
    return %c0_i32, %c0_i32_0 : i32, i32
  }
  func.func @transform_5(%arg0: i32) -> (i32, i32) {
    %c0_i32 = arith.constant 0 : i32
    %c0_i32_0 = arith.constant 0 : i32
    return %arg0, %c0_i32 : i32, i32
  }
  func.func @transform_6(%arg0: i32) -> (i32, i32) {
    %c0_i32 = arith.constant 0 : i32
    %c0_i32_0 = arith.constant 0 : i32
    return %arg0, %c0_i32 : i32, i32
  }
}

module attributes {stable_mosaic.version = 11 : i64} {
  func.func @_block_kernel(%arg0: i32, %arg1: memref<16x80xbf16, #tpu.memory_space<vmem>>, %arg2: memref<80x16xbf16, #tpu.memory_space<vmem>>, %arg3: memref<1x16xf32, #tpu.memory_space<vmem>>, %arg4: memref<16x8xbf16, #tpu.memory_space<vmem>>, %arg5: memref<1x8xf32, #tpu.memory_space<vmem>>, %arg6: memref<16x8xbf16, #tpu.memory_space<vmem>>, %arg7: memref<16x8xbf16, #tpu.memory_space<vmem>>) attributes {dimension_semantics = [#tpu.dimension_semantics<parallel>], iteration_bounds = array<i64: 1>, scalar_prefetch = 0 : i64, scratch_operands = 0 : i64, tpu.core_type = #tpu.core_type<tc>, window_params = [{transform_indices = @transform_0, window_bounds = array<i64: 16, 80>}, {pipeline_mode = #tpu.pipeline_mode<synchronous>, transform_indices = @transform_1, window_bounds = array<i64: 80, 16>}, {pipeline_mode = #tpu.pipeline_mode<synchronous>, transform_indices = @transform_2, window_bounds = array<i64: 1, 16>}, {pipeline_mode = #tpu.pipeline_mode<synchronous>, transform_indices = @transform_3, window_bounds = array<i64: 16, 8>}, {pipeline_mode = #tpu.pipeline_mode<synchronous>, transform_indices = @transform_4, window_bounds = array<i64: 1, 8>}, {transform_indices = @transform_5, window_bounds = array<i64: 16, 8>}, {transform_indices = @transform_6, window_bounds = array<i64: 16, 8>}]} {
    %c0 = arith.constant 0 : index
    %c0_0 = arith.constant 0 : index
    %0 = vector.load %arg1[%c0, %c0_0] : memref<16x80xbf16, #tpu.memory_space<vmem>>, vector<16x80xbf16>
    %c0_1 = arith.constant 0 : index
    %c0_2 = arith.constant 0 : index
    %1 = vector.load %arg2[%c0_1, %c0_2] : memref<80x16xbf16, #tpu.memory_space<vmem>>, vector<80x16xbf16>
    %cst = arith.constant dense<0.000000e+00> : vector<16x16xf32>
    %2 = tpu.matmul %0, %1, %cst {dimension_numbers = #tpu.dot_dimension_numbers<[1], [0], [0], [1], [0, 0, 1, 1], [], []>} : vector<16x80xbf16>, vector<80x16xbf16>, vector<16x16xf32> -> vector<16x16xf32>
    %c0_3 = arith.constant 0 : index
    %c0_4 = arith.constant 0 : index
    %3 = vector.load %arg3[%c0_3, %c0_4] : memref<1x16xf32, #tpu.memory_space<vmem>>, vector<1x16xf32>
    %4 = vector.broadcast %3 : vector<1x16xf32> to vector<16x16xf32>
    %5 = arith.addf %2, %4 : vector<16x16xf32>
    %cst_5 = arith.constant 0.000000e+00 : f32
    %6 = vector.broadcast %cst_5 : f32 to vector<16x16xf32>
    %7 = arith.maximumf %5, %6 : vector<16x16xf32>
    %8 = arith.truncf %7 : vector<16x16xf32> to vector<16x16xbf16>
    %c0_6 = arith.constant 0 : index
    %c0_7 = arith.constant 0 : index
    %9 = vector.load %arg4[%c0_6, %c0_7] : memref<16x8xbf16, #tpu.memory_space<vmem>>, vector<16x8xbf16>
    %cst_8 = arith.constant dense<0.000000e+00> : vector<16x8xf32>
    %10 = tpu.matmul %8, %9, %cst_8 {dimension_numbers = #tpu.dot_dimension_numbers<[1], [0], [0], [1], [0, 0, 1, 1], [], []>} : vector<16x16xbf16>, vector<16x8xbf16>, vector<16x8xf32> -> vector<16x8xf32>
    %c0_9 = arith.constant 0 : index
    %c0_10 = arith.constant 0 : index
    %11 = vector.load %arg5[%c0_9, %c0_10] : memref<1x8xf32, #tpu.memory_space<vmem>>, vector<1x8xf32>
    %12 = vector.broadcast %11 : vector<1x8xf32> to vector<16x8xf32>
    %13 = arith.addf %10, %12 : vector<16x8xf32>
    %cst_11 = arith.constant 0.000000e+00 : f32
    %14 = vector.broadcast %cst_11 : f32 to vector<16x8xf32>
    %15 = arith.maximumf %13, %14 : vector<16x8xf32>
    %c0_12 = arith.constant 0 : index
    %c0_13 = arith.constant 0 : index
    %16 = vector.load %arg6[%c0_12, %c0_13] : memref<16x8xbf16, #tpu.memory_space<vmem>>, vector<16x8xbf16>
    %17 = arith.extf %16 : vector<16x8xbf16> to vector<16x8xf32>
    %18 = arith.addf %17, %15 : vector<16x8xf32>
    %19 = arith.truncf %18 : vector<16x8xf32> to vector<16x8xbf16>
    %c0_14 = arith.constant 0 : index
    %c0_15 = arith.constant 0 : index
    %20 = vector.load %arg7[%c0_14, %c0_15] : memref<16x8xbf16, #tpu.memory_space<vmem>>, vector<16x8xbf16>
    tpu.vector_store %arg7[%c0_14, %c0_15], %19 {strides = array<i32>} : memref<16x8xbf16, #tpu.memory_space<vmem>>, vector<16x8xbf16>,
    return
  }
  func.func @transform_0(%arg0: i32) -> (i32, i32) {
    %c0_i32 = arith.constant 0 : i32
    %c0_i32_0 = arith.constant 0 : i32
    return %arg0, %c0_i32 : i32, i32
  }
  func.func @transform_1(%arg0: i32) -> (i32, i32) {
    %c0_i32 = arith.constant 0 : i32
    %c0_i32_0 = arith.constant 0 : i32
    %c0_i32_1 = arith.constant 0 : i32
    return %c0_i32, %c0_i32_0 : i32, i32
  }
  func.func @transform_2(%arg0: i32) -> (i32, i32) {
    %c0_i32 = arith.constant 0 : i32
    %c0_i32_0 = arith.constant 0 : i32
    %c0_i32_1 = arith.constant 0 : i32
    return %c0_i32, %c0_i32_0 : i32, i32
  }
  func.func @transform_3(%arg0: i32) -> (i32, i32) {
    %c0_i32 = arith.constant 0 : i32
    %c0_i32_0 = arith.constant 0 : i32
    %c0_i32_1 = arith.constant 0 : i32
    return %c0_i32, %c0_i32_0 : i32, i32
  }
  func.func @transform_4(%arg0: i32) -> (i32, i32) {
    %c0_i32 = arith.constant 0 : i32
    %c0_i32_0 = arith.constant 0 : i32
    %c0_i32_1 = arith.constant 0 : i32
    return %c0_i32, %c0_i32_0 : i32, i32
  }
  func.func @transform_5(%arg0: i32) -> (i32, i32) {
    %c0_i32 = arith.constant 0 : i32
    %c0_i32_0 = arith.constant 0 : i32
    return %arg0, %c0_i32 : i32, i32
  }
  func.func @transform_6(%arg0: i32) -> (i32, i32) {
    %c0_i32 = arith.constant 0 : i32
    %c0_i32_0 = arith.constant 0 : i32
    return %arg0, %c0_i32 : i32, i32
  }
}

module attributes {stable_mosaic.version = 11 : i64} {
  func.func @_conv_gemm_kernel(%arg0: i32, %arg1: memref<16x80xbf16, #tpu.memory_space<vmem>>, %arg2: memref<80x16xbf16, #tpu.memory_space<vmem>>, %arg3: memref<3x16xf32, #tpu.memory_space<vmem>>, %arg4: memref<16x16xbf16, #tpu.memory_space<vmem>>) attributes {dimension_semantics = [#tpu.dimension_semantics<parallel>], iteration_bounds = array<i64: 1>, scalar_prefetch = 0 : i64, scratch_operands = 0 : i64, tpu.core_type = #tpu.core_type<tc>, window_params = [{transform_indices = @transform_0, window_bounds = array<i64: 16, 80>}, {pipeline_mode = #tpu.pipeline_mode<synchronous>, transform_indices = @transform_1, window_bounds = array<i64: 80, 16>}, {pipeline_mode = #tpu.pipeline_mode<synchronous>, transform_indices = @transform_2, window_bounds = array<i64: 3, 16>}, {transform_indices = @transform_3, window_bounds = array<i64: 16, 16>}]} {
    %c0 = arith.constant 0 : index
    %c0_0 = arith.constant 0 : index
    %0 = vector.load %arg1[%c0, %c0_0] : memref<16x80xbf16, #tpu.memory_space<vmem>>, vector<16x80xbf16>
    %c0_1 = arith.constant 0 : index
    %c0_2 = arith.constant 0 : index
    %1 = vector.load %arg2[%c0_1, %c0_2] : memref<80x16xbf16, #tpu.memory_space<vmem>>, vector<80x16xbf16>
    %cst = arith.constant dense<0.000000e+00> : vector<16x16xf32>
    %2 = tpu.matmul %0, %1, %cst {dimension_numbers = #tpu.dot_dimension_numbers<[1], [0], [0], [1], [0, 0, 1, 1], [], []>} : vector<16x80xbf16>, vector<80x16xbf16>, vector<16x16xf32> -> vector<16x16xf32>
    %c0_3 = arith.constant 0 : index
    %c0_4 = arith.constant 0 : index
    %3 = vector.load %arg3[%c0_3, %c0_4] : memref<3x16xf32, #tpu.memory_space<vmem>>, vector<1x16xf32>
    %4 = vector.broadcast %3 : vector<1x16xf32> to vector<16x16xf32>
    %5 = arith.addf %2, %4 : vector<16x16xf32>
    %cst_5 = arith.constant 0.000000e+00 : f32
    %6 = vector.broadcast %cst_5 : f32 to vector<16x16xf32>
    %7 = arith.maximumf %5, %6 : vector<16x16xf32>
    %c1 = arith.constant 1 : index
    %c0_6 = arith.constant 0 : index
    %8 = vector.load %arg3[%c1, %c0_6] : memref<3x16xf32, #tpu.memory_space<vmem>>, vector<1x16xf32>
    %9 = vector.broadcast %8 : vector<1x16xf32> to vector<16x16xf32>
    %10 = arith.mulf %7, %9 : vector<16x16xf32>
    %c2 = arith.constant 2 : index
    %c0_7 = arith.constant 0 : index
    %11 = vector.load %arg3[%c2, %c0_7] : memref<3x16xf32, #tpu.memory_space<vmem>>, vector<1x16xf32>
    %12 = vector.broadcast %11 : vector<1x16xf32> to vector<16x16xf32>
    %13 = arith.addf %10, %12 : vector<16x16xf32>
    %14 = arith.truncf %13 : vector<16x16xf32> to vector<16x16xbf16>
    %c0_8 = arith.constant 0 : index
    %c0_9 = arith.constant 0 : index
    %15 = vector.load %arg4[%c0_8, %c0_9] : memref<16x16xbf16, #tpu.memory_space<vmem>>, vector<16x16xbf16>
    tpu.vector_store %arg4[%c0_8, %c0_9], %14 {strides = array<i32>} : memref<16x16xbf16, #tpu.memory_space<vmem>>, vector<16x16xbf16>,
    return
  }
  func.func @transform_0(%arg0: i32) -> (i32, i32) {
    %c0_i32 = arith.constant 0 : i32
    %c0_i32_0 = arith.constant 0 : i32
    return %arg0, %c0_i32 : i32, i32
  }
  func.func @transform_1(%arg0: i32) -> (i32, i32) {
    %c0_i32 = arith.constant 0 : i32
    %c0_i32_0 = arith.constant 0 : i32
    %c0_i32_1 = arith.constant 0 : i32
    return %c0_i32, %c0_i32_0 : i32, i32
  }
  func.func @transform_2(%arg0: i32) -> (i32, i32) {
    %c0_i32 = arith.constant 0 : i32
    %c0_i32_0 = arith.constant 0 : i32
    %c0_i32_1 = arith.constant 0 : i32
    return %c0_i32, %c0_i32_0 : i32, i32
  }
  func.func @transform_3(%arg0: i32) -> (i32, i32) {
    %c0_i32 = arith.constant 0 : i32
    %c0_i32_0 = arith.constant 0 : i32
    return %arg0, %c0_i32 : i32, i32
  }
}

module attributes {stable_mosaic.version = 11 : i64} {
  func.func @_conv_gemm_kernel(%arg0: i32, %arg1: memref<16x80xbf16, #tpu.memory_space<vmem>>, %arg2: memref<80x8xbf16, #tpu.memory_space<vmem>>, %arg3: memref<3x8xf32, #tpu.memory_space<vmem>>, %arg4: memref<16x8xbf16, #tpu.memory_space<vmem>>) attributes {dimension_semantics = [#tpu.dimension_semantics<parallel>], iteration_bounds = array<i64: 1>, scalar_prefetch = 0 : i64, scratch_operands = 0 : i64, tpu.core_type = #tpu.core_type<tc>, window_params = [{transform_indices = @transform_0, window_bounds = array<i64: 16, 80>}, {pipeline_mode = #tpu.pipeline_mode<synchronous>, transform_indices = @transform_1, window_bounds = array<i64: 80, 8>}, {pipeline_mode = #tpu.pipeline_mode<synchronous>, transform_indices = @transform_2, window_bounds = array<i64: 3, 8>}, {transform_indices = @transform_3, window_bounds = array<i64: 16, 8>}]} {
    %c0 = arith.constant 0 : index
    %c0_0 = arith.constant 0 : index
    %0 = vector.load %arg1[%c0, %c0_0] : memref<16x80xbf16, #tpu.memory_space<vmem>>, vector<16x80xbf16>
    %c0_1 = arith.constant 0 : index
    %c0_2 = arith.constant 0 : index
    %1 = vector.load %arg2[%c0_1, %c0_2] : memref<80x8xbf16, #tpu.memory_space<vmem>>, vector<80x8xbf16>
    %cst = arith.constant dense<0.000000e+00> : vector<16x8xf32>
    %2 = tpu.matmul %0, %1, %cst {dimension_numbers = #tpu.dot_dimension_numbers<[1], [0], [0], [1], [0, 0, 1, 1], [], []>} : vector<16x80xbf16>, vector<80x8xbf16>, vector<16x8xf32> -> vector<16x8xf32>
    %c0_3 = arith.constant 0 : index
    %c0_4 = arith.constant 0 : index
    %3 = vector.load %arg3[%c0_3, %c0_4] : memref<3x8xf32, #tpu.memory_space<vmem>>, vector<1x8xf32>
    %4 = vector.broadcast %3 : vector<1x8xf32> to vector<16x8xf32>
    %5 = arith.addf %2, %4 : vector<16x8xf32>
    %cst_5 = arith.constant 0.000000e+00 : f32
    %6 = vector.broadcast %cst_5 : f32 to vector<16x8xf32>
    %7 = arith.maximumf %5, %6 : vector<16x8xf32>
    %c1 = arith.constant 1 : index
    %c0_6 = arith.constant 0 : index
    %8 = vector.load %arg3[%c1, %c0_6] : memref<3x8xf32, #tpu.memory_space<vmem>>, vector<1x8xf32>
    %9 = vector.broadcast %8 : vector<1x8xf32> to vector<16x8xf32>
    %10 = arith.mulf %7, %9 : vector<16x8xf32>
    %c2 = arith.constant 2 : index
    %c0_7 = arith.constant 0 : index
    %11 = vector.load %arg3[%c2, %c0_7] : memref<3x8xf32, #tpu.memory_space<vmem>>, vector<1x8xf32>
    %12 = vector.broadcast %11 : vector<1x8xf32> to vector<16x8xf32>
    %13 = arith.addf %10, %12 : vector<16x8xf32>
    %14 = arith.truncf %13 : vector<16x8xf32> to vector<16x8xbf16>
    %c0_8 = arith.constant 0 : index
    %c0_9 = arith.constant 0 : index
    %15 = vector.load %arg4[%c0_8, %c0_9] : memref<16x8xbf16, #tpu.memory_space<vmem>>, vector<16x8xbf16>
    tpu.vector_store %arg4[%c0_8, %c0_9], %14 {strides = array<i32>} : memref<16x8xbf16, #tpu.memory_space<vmem>>, vector<16x8xbf16>,
    return
  }
  func.func @transform_0(%arg0: i32) -> (i32, i32) {
    %c0_i32 = arith.constant 0 : i32
    %c0_i32_0 = arith.constant 0 : i32
    return %arg0, %c0_i32 : i32, i32
  }
  func.func @transform_1(%arg0: i32) -> (i32, i32) {
    %c0_i32 = arith.constant 0 : i32
    %c0_i32_0 = arith.constant 0 : i32
    %c0_i32_1 = arith.constant 0 : i32
    return %c0_i32, %c0_i32_0 : i32, i32
  }
  func.func @transform_2(%arg0: i32) -> (i32, i32) {
    %c0_i32 = arith.constant 0 : i32
    %c0_i32_0 = arith.constant 0 : i32
    %c0_i32_1 = arith.constant 0 : i32
    return %c0_i32, %c0_i32_0 : i32, i32
  }
  func.func @transform_3(%arg0: i32) -> (i32, i32) {
    %c0_i32 = arith.constant 0 : i32
    %c0_i32_0 = arith.constant 0 : i32
    return %arg0, %c0_i32 : i32, i32
  }
}

module attributes {stable_mosaic.version = 11 : i64} {
  func.func @_head_chain_kernel(%arg0: i32, %arg1: memref<2x16xbf16, #tpu.memory_space<vmem>>, %arg2: memref<16x24xbf16, #tpu.memory_space<vmem>>, %arg3: memref<3x24xf32, #tpu.memory_space<vmem>>, %arg4: memref<24x24xbf16, #tpu.memory_space<vmem>>, %arg5: memref<3x24xf32, #tpu.memory_space<vmem>>, %arg6: memref<24x5xbf16, #tpu.memory_space<vmem>>, %arg7: memref<1x5xf32, #tpu.memory_space<vmem>>, %arg8: memref<2x5xf32, #tpu.memory_space<vmem>>) attributes {dimension_semantics = [#tpu.dimension_semantics<arbitrary>], iteration_bounds = array<i64: 1>, scalar_prefetch = 0 : i64, scratch_operands = 0 : i64, tpu.core_type = #tpu.core_type<tc>, window_params = [{pipeline_mode = #tpu.pipeline_mode<synchronous>, transform_indices = @transform_0, window_bounds = array<i64: 2, 16>}, {pipeline_mode = #tpu.pipeline_mode<synchronous>, transform_indices = @transform_1, window_bounds = array<i64: 16, 24>}, {pipeline_mode = #tpu.pipeline_mode<synchronous>, transform_indices = @transform_2, window_bounds = array<i64: 3, 24>}, {pipeline_mode = #tpu.pipeline_mode<synchronous>, transform_indices = @transform_3, window_bounds = array<i64: 24, 24>}, {pipeline_mode = #tpu.pipeline_mode<synchronous>, transform_indices = @transform_4, window_bounds = array<i64: 3, 24>}, {pipeline_mode = #tpu.pipeline_mode<synchronous>, transform_indices = @transform_5, window_bounds = array<i64: 24, 5>}, {pipeline_mode = #tpu.pipeline_mode<synchronous>, transform_indices = @transform_6, window_bounds = array<i64: 1, 5>}, {pipeline_mode = #tpu.pipeline_mode<synchronous>, transform_indices = @transform_7, window_bounds = array<i64: 2, 5>}]} {
    %c0 = arith.constant 0 : index
    %c0_0 = arith.constant 0 : index
    %0 = vector.load %arg1[%c0, %c0_0] : memref<2x16xbf16, #tpu.memory_space<vmem>>, vector<2x16xbf16>
    %c0_1 = arith.constant 0 : index
    %c0_2 = arith.constant 0 : index
    %1 = vector.load %arg2[%c0_1, %c0_2] : memref<16x24xbf16, #tpu.memory_space<vmem>>, vector<16x24xbf16>
    %cst = arith.constant dense<0.000000e+00> : vector<2x24xf32>
    %2 = tpu.matmul %0, %1, %cst {dimension_numbers = #tpu.dot_dimension_numbers<[1], [0], [0], [1], [0, 0, 1, 1], [], []>} : vector<2x16xbf16>, vector<16x24xbf16>, vector<2x24xf32> -> vector<2x24xf32>
    %c0_3 = arith.constant 0 : index
    %c0_4 = arith.constant 0 : index
    %3 = vector.load %arg3[%c0_3, %c0_4] : memref<3x24xf32, #tpu.memory_space<vmem>>, vector<1x24xf32>
    %4 = vector.broadcast %3 : vector<1x24xf32> to vector<2x24xf32>
    %5 = arith.addf %2, %4 : vector<2x24xf32>
    %cst_5 = arith.constant 0.000000e+00 : f32
    %6 = vector.broadcast %cst_5 : f32 to vector<2x24xf32>
    %7 = arith.maximumf %5, %6 : vector<2x24xf32>
    %c1 = arith.constant 1 : index
    %c0_6 = arith.constant 0 : index
    %8 = vector.load %arg3[%c1, %c0_6] : memref<3x24xf32, #tpu.memory_space<vmem>>, vector<1x24xf32>
    %9 = vector.broadcast %8 : vector<1x24xf32> to vector<2x24xf32>
    %10 = arith.mulf %7, %9 : vector<2x24xf32>
    %c2 = arith.constant 2 : index
    %c0_7 = arith.constant 0 : index
    %11 = vector.load %arg3[%c2, %c0_7] : memref<3x24xf32, #tpu.memory_space<vmem>>, vector<1x24xf32>
    %12 = vector.broadcast %11 : vector<1x24xf32> to vector<2x24xf32>
    %13 = arith.addf %10, %12 : vector<2x24xf32>
    %14 = arith.truncf %13 : vector<2x24xf32> to vector<2x24xbf16>
    %c0_8 = arith.constant 0 : index
    %c0_9 = arith.constant 0 : index
    %15 = vector.load %arg4[%c0_8, %c0_9] : memref<24x24xbf16, #tpu.memory_space<vmem>>, vector<24x24xbf16>
    %cst_10 = arith.constant dense<0.000000e+00> : vector<2x24xf32>
    %16 = tpu.matmul %14, %15, %cst_10 {dimension_numbers = #tpu.dot_dimension_numbers<[1], [0], [0], [1], [0, 0, 1, 1], [], []>} : vector<2x24xbf16>, vector<24x24xbf16>, vector<2x24xf32> -> vector<2x24xf32>
    %c0_11 = arith.constant 0 : index
    %c0_12 = arith.constant 0 : index
    %17 = vector.load %arg5[%c0_11, %c0_12] : memref<3x24xf32, #tpu.memory_space<vmem>>, vector<1x24xf32>
    %18 = vector.broadcast %17 : vector<1x24xf32> to vector<2x24xf32>
    %19 = arith.addf %16, %18 : vector<2x24xf32>
    %cst_13 = arith.constant 0.000000e+00 : f32
    %20 = vector.broadcast %cst_13 : f32 to vector<2x24xf32>
    %21 = arith.maximumf %19, %20 : vector<2x24xf32>
    %c1_14 = arith.constant 1 : index
    %c0_15 = arith.constant 0 : index
    %22 = vector.load %arg5[%c1_14, %c0_15] : memref<3x24xf32, #tpu.memory_space<vmem>>, vector<1x24xf32>
    %23 = vector.broadcast %22 : vector<1x24xf32> to vector<2x24xf32>
    %24 = arith.mulf %21, %23 : vector<2x24xf32>
    %c2_16 = arith.constant 2 : index
    %c0_17 = arith.constant 0 : index
    %25 = vector.load %arg5[%c2_16, %c0_17] : memref<3x24xf32, #tpu.memory_space<vmem>>, vector<1x24xf32>
    %26 = vector.broadcast %25 : vector<1x24xf32> to vector<2x24xf32>
    %27 = arith.addf %24, %26 : vector<2x24xf32>
    %28 = arith.truncf %27 : vector<2x24xf32> to vector<2x24xbf16>
    %c0_18 = arith.constant 0 : index
    %c0_19 = arith.constant 0 : index
    %29 = vector.load %arg6[%c0_18, %c0_19] : memref<24x5xbf16, #tpu.memory_space<vmem>>, vector<24x5xbf16>
    %cst_20 = arith.constant dense<0.000000e+00> : vector<2x5xf32>
    %30 = tpu.matmul %28, %29, %cst_20 {dimension_numbers = #tpu.dot_dimension_numbers<[1], [0], [0], [1], [0, 0, 1, 1], [], []>} : vector<2x24xbf16>, vector<24x5xbf16>, vector<2x5xf32> -> vector<2x5xf32>
    %c0_21 = arith.constant 0 : index
    %c0_22 = arith.constant 0 : index
    %31 = vector.load %arg7[%c0_21, %c0_22] : memref<1x5xf32, #tpu.memory_space<vmem>>, vector<1x5xf32>
    %32 = vector.broadcast %31 : vector<1x5xf32> to vector<2x5xf32>
    %33 = arith.addf %30, %32 : vector<2x5xf32>
    %c0_23 = arith.constant 0 : index
    %c0_24 = arith.constant 0 : index
    %34 = vector.load %arg8[%c0_23, %c0_24] : memref<2x5xf32, #tpu.memory_space<vmem>>, vector<2x5xf32>
    tpu.vector_store %arg8[%c0_23, %c0_24], %33 {strides = array<i32>} : memref<2x5xf32, #tpu.memory_space<vmem>>, vector<2x5xf32>,
    return
  }
  func.func @transform_0(%arg0: i32) -> (i32, i32) {
    %c0_i32 = arith.constant 0 : i32
    %c0_i32_0 = arith.constant 0 : i32
    %c0_i32_1 = arith.constant 0 : i32
    return %c0_i32, %c0_i32_0 : i32, i32
  }
  func.func @transform_1(%arg0: i32) -> (i32, i32) {
    %c0_i32 = arith.constant 0 : i32
    %c0_i32_0 = arith.constant 0 : i32
    %c0_i32_1 = arith.constant 0 : i32
    return %c0_i32, %c0_i32_0 : i32, i32
  }
  func.func @transform_2(%arg0: i32) -> (i32, i32) {
    %c0_i32 = arith.constant 0 : i32
    %c0_i32_0 = arith.constant 0 : i32
    %c0_i32_1 = arith.constant 0 : i32
    return %c0_i32, %c0_i32_0 : i32, i32
  }
  func.func @transform_3(%arg0: i32) -> (i32, i32) {
    %c0_i32 = arith.constant 0 : i32
    %c0_i32_0 = arith.constant 0 : i32
    %c0_i32_1 = arith.constant 0 : i32
    return %c0_i32, %c0_i32_0 : i32, i32
  }
  func.func @transform_4(%arg0: i32) -> (i32, i32) {
    %c0_i32 = arith.constant 0 : i32
    %c0_i32_0 = arith.constant 0 : i32
    %c0_i32_1 = arith.constant 0 : i32
    return %c0_i32, %c0_i32_0 : i32, i32
  }
  func.func @transform_5(%arg0: i32) -> (i32, i32) {
    %c0_i32 = arith.constant 0 : i32
    %c0_i32_0 = arith.constant 0 : i32
    %c0_i32_1 = arith.constant 0 : i32
    return %c0_i32, %c0_i32_0 : i32, i32
  }
  func.func @transform_6(%arg0: i32) -> (i32, i32) {
    %c0_i32 = arith.constant 0 : i32
    %c0_i32_0 = arith.constant 0 : i32
    %c0_i32_1 = arith.constant 0 : i32
    return %c0_i32, %c0_i32_0 : i32, i32
  }
  func.func @transform_7(%arg0: i32) -> (i32, i32) {
    %c0_i32 = arith.constant 0 : i32
    %c0_i32_0 = arith.constant 0 : i32
    %c0_i32_1 = arith.constant 0 : i32
    return %c0_i32, %c0_i32_0 : i32, i32
  }
}

</mosaic_0001>

<llo_original>
// kernel: rhnet_forward.7
$region0: #{rhnet_forward.7}
  #allocation0 [shape = 'u32[]', space=smem, size = 0x4, offset = 0x4, fixed_abs, tag = 'smem constant byte address 0x4 - core index']
  #allocation1 [shape = 'u32[144,128]{1,0:T(1,128)}', space=vmem, size = 0x12000, scoped, tag = 'internal scratch']
  %s0 = inlined_call_operand.vmem [shape: bf16[128,32], index: 0, kind: input, shape index: {}]
  %s1 = inlined_call_operand.vmem [shape: bf16[32,8], index: 1, kind: input, shape index: {}]
  %s2 = inlined_call_operand.vmem [shape: f32[3,8], index: 2, kind: input, shape index: {}]
  %s3 = inlined_call_operand.vmem [shape: bf16[128,8], index: 3, kind: output, shape index: {}]
  %s4 = sld [smem:[#allocation0]]
  $region22: #{rhnet_forward.7} parent=0
    _
  %s6 = ssub.s32 1, %s4
  %s7 = scalar_select 0, %s6, %s4
  // Predicated region
  $region2: #{rhnet_forward.7} parent=0 // pred_check
    _
  $region3: #{rhnet_forward.7} parent=0 // pred_check_branch
    %9 = sbr.rel (0) target = $region5
  $region4: #{rhnet_forward.7} parent=0 // pred_region
    _
  $region5: #{rhnet_forward.7} parent=0 // pred_fallthru
    _
  // Predicated region
  $region6: #{rhnet_forward.7} parent=0 // pred_check
    _
  $region7: #{rhnet_forward.7} parent=0 // pred_check_branch
    %11 = sbr.rel (0) target = $region9
  $region8: #{rhnet_forward.7} parent=0 // pred_region
    _
  $region9: #{rhnet_forward.7} parent=0 // pred_fallthru
    _
  // Predicated region
  $region10: #{rhnet_forward.7} parent=0 // pred_check
    _
  $region11: #{rhnet_forward.7} parent=0 // pred_check_branch
    %13 = sbr.rel (0) target = $region13
  $region12: #{rhnet_forward.7} parent=0 // pred_region
    _
  $region13: #{rhnet_forward.7} parent=0 // pred_fallthru
    _
  %v15 = vld [vmem:[%s0] sm:$0xf]
  %v16 = vld [vmem:[%s0 + $0x4] sm:$0xf]
  %v17 = vld [vmem:[%s0 + $0x8] sm:$0xf]
  %v18 = vld [vmem:[%s0 + $0xc] sm:$0xf]
  %v19 = vld [vmem:[%s0 + $0x10] sm:$0xf]
  %v20 = vld [vmem:[%s0 + $0x14] sm:$0xf]
  %v21 = vld [vmem:[%s0 + $0x18] sm:$0xf]
  %v22 = vld [vmem:[%s0 + $0x1c] sm:$0xf]
  %v23 = vld [vmem:[%s0 + $0x20] sm:$0xf]
  %v24 = vld [vmem:[%s0 + $0x24] sm:$0xf]
  %v25 = vld [vmem:[%s0 + $0x28] sm:$0xf]
  %v26 = vld [vmem:[%s0 + $0x2c] sm:$0xf]
  %v27 = vld [vmem:[%s0 + $0x30] sm:$0xf]
  %v28 = vld [vmem:[%s0 + $0x34] sm:$0xf]
  %v29 = vld [vmem:[%s0 + $0x38] sm:$0xf]
  %v30 = vld [vmem:[%s0 + $0x3c] sm:$0xf]
  %v31 = vld [vmem:[%s1] sm:$0xf]
  %v32 = vld [vmem:[%s1 + $0x4] sm:$0xf]
  %v33 = vld [vmem:[%s1 + $0x8] sm:$0xf]
  %v34 = vld [vmem:[%s1 + $0xc] sm:$0xf]
  %v35 = vld [vmem:[%s2] sm:$0x1]
  %v36 = vlaneseq
  %v37 = vshrl.u32 %v36, 7
  %v38 = vsub.s32 0, %v37
  %v39 = vrot.slane %v35, %v38
  %v56 = vunpack.c.l.b16 %v15
  %v57 = vunpack.c.l.b16 %v16
  %v58 = vunpack.c.l.b16 %v17
  %v59 = vunpack.c.l.b16 %v18
  %v60 = vunpack.c.l.b16 %v19
  %v61 = vunpack.c.l.b16 %v20
  %v62 = vunpack.c.l.b16 %v21
  %v63 = vunpack.c.l.b16 %v22
  %v64 = vunpack.c.l.b16 %v23
  %v65 = vunpack.c.l.b16 %v24
  %v66 = vunpack.c.l.b16 %v25
  %v67 = vunpack.c.l.b16 %v26
  %v68 = vunpack.c.l.b16 %v27
  %v69 = vunpack.c.l.b16 %v28
  %v70 = vunpack.c.l.b16 %v29
  %v71 = vunpack.c.l.b16 %v30
  %v72 = vpack.c.b16 %v57, %v56
  %v73 = vpack.c.b16 %v59, %v58
  %v74 = vpack.c.b16 %v61, %v60
  %v75 = vpack.c.b16 %v63, %v62
  %v76 = vpack.c.b16 %v65, %v64
  %v77 = vpack.c.b16 %v67, %v66
  %v78 = vpack.c.b16 %v69, %v68
  %v79 = vpack.c.b16 %v71, %v70
  %v84 = vunpack.c.l.b16 %v31
  %v85 = vunpack.c.l.b16 %v32
  %v86 = vunpack.c.l.b16 %v33
  %v87 = vunpack.c.l.b16 %v34
  %v88 = vpack.c.b16 %v85, %v84
  %v89 = vpack.c.b16 %v87, %v86
  %vm92 = vcmask 261120
  %v94 = vsel %vm92, %v72, 0
  %v97 = vsel %vm92, %v73, 0
  %v100 = vsel %vm92, %v74, 0
  %v103 = vsel %vm92, %v75, 0
  %v106 = vsel %vm92, %v76, 0
  %v109 = vsel %vm92, %v77, 0
  %v112 = vsel %vm92, %v78, 0
  %v115 = vsel %vm92, %v79, 0
  %117 = vmatprep.subr.bf16.mxu0 0
  %118 = vmatpush1.bf16.msra.mxu0 %v88
  %119 = vmatprep.subr.bf16.mxu0 0
  %120 = vmatpush1.bf16.msra.mxu0 %v89
  %121 = vmatprep.subr.bf16.mxu0 0
  %122 = vmatpush1.bf16.msra.mxu0 0
  %123 = vmatprep.subr.bf16.mxu0 0
  %124 = vmatpush1.bf16.msra.mxu0 0
  %125 = vmatprep.subr.bf16.mxu0 0
  %126 = vmatpush1.bf16.msra.mxu0 0
  %127 = vmatprep.subr.bf16.mxu0 0
  %128 = vmatpush1.bf16.msra.mxu0 0
  %129 = vmatprep.subr.bf16.mxu0 0
  %130 = vmatpush1.bf16.msra.mxu0 0
  %131 = vmatprep.subr.bf16.mxu0 0
  %132 = vmatpush1.bf16.msra.mxu0 0
  %133 = vmatprep.subr.bf16.mxu0 0
  %134 = vmatpush1.bf16.msra.mxu0 0
  %135 = vmatprep.subr.bf16.mxu0 0
  %136 = vmatpush1.bf16.msra.mxu0 0
  %137 = vmatprep.subr.bf16.mxu0 0
  %138 = vmatpush1.bf16.msra.mxu0 0
  %139 = vmatprep.subr.bf16.mxu0 0
  %140 = vmatpush1.bf16.msra.mxu0 0
  %141 = vmatprep.subr.bf16.mxu0 0
  %142 = vmatpush1.bf16.msra.mxu0 0
  %143 = vmatprep.subr.bf16.mxu0 0
  %144 = vmatpush1.bf16.msra.mxu0 0
  %145 = vmatprep.subr.bf16.mxu0 0
  %146 = vmatpush1.bf16.msra.mxu0 0
  %147 = vmatprep.subr.bf16.mxu0 0
  %148 = vmatpush1.bf16.msra.mxu0 0
  %149 = vmatprep.mubr.bf16.mxu0 0
  %150 = vmatmul.mubr.bf16.gmra.mrb[0].mxu0 %v94
  %v151 = vpop.f32.mrb[0].mxu0
  %v152 = vadd.f32 %v39, %v151
  %v153 = vpop.f32.mrb[0].mxu0
  %v154 = vpop.f32.mrb[0].mxu0
  %v155 = vadd.f32 %v39, %v154
  %v156 = vpop.f32.mrb[0].mxu0
  %157 = vmatprep.mubr.bf16.mxu0 0
  %158 = vmatmul.mubr.bf16.gmra.mrb[0].mxu0 %v97
  %v159 = vpop.f32.mrb[0].mxu0
  %v160 = vadd.f32 %v39, %v159
  %v161 = vpop.f32.mrb[0].mxu0
  %v162 = vpop.f32.mrb[0].mxu0
  %v163 = vadd.f32 %v39, %v162
  %v164 = vpop.f32.mrb[0].mxu0
  %165 = vmatprep.mubr.bf16.mxu0 0
  %166 = vmatmul.mubr.bf16.gmra.mrb[0].mxu0 %v100
  %v167 = vpop.f32.mrb[0].mxu0
  %v168 = vadd.f32 %v39, %v167
  %v169 = vpop.f32.mrb[0].mxu0
  %v170 = vpop.f32.mrb[0].mxu0
  %v171 = vadd.f32 %v39, %v170
  %v172 = vpop.f32.mrb[0].mxu0
  %173 = vmatprep.mubr.bf16.mxu0 0
  %174 = vmatmul.mubr.bf16.gmra.mrb[0].mxu0 %v103
  %v175 = vpop.f32.mrb[0].mxu0
  %v176 = vadd.f32 %v39, %v175
  %v177 = vpop.f32.mrb[0].mxu0
  %v178 = vpop.f32.mrb[0].mxu0
  %v179 = vadd.f32 %v39, %v178
  %v180 = vpop.f32.mrb[0].mxu0
  %181 = vmatprep.mubr.bf16.mxu0 0
  %182 = vmatmul.mubr.bf16.gmra.mrb[0].mxu0 %v106
  %v183 = vpop.f32.mrb[0].mxu0
  %v184 = vadd.f32 %v39, %v183
  %v185 = vpop.f32.mrb[0].mxu0
  %v186 = vpop.f32.mrb[0].mxu0
  %v187 = vadd.f32 %v39, %v186
  %v188 = vpop.f32.mrb[0].mxu0
  %189 = vmatprep.mubr.bf16.mxu0 0
  %190 = vmatmul.mubr.bf16.gmra.mrb[0].mxu0 %v109
  %v191 = vpop.f32.mrb[0].mxu0
  %v192 = vadd.f32 %v39, %v191
  %v193 = vpop.f32.mrb[0].mxu0
  %v194 = vpop.f32.mrb[0].mxu0
  %v195 = vadd.f32 %v39, %v194
  %v196 = vpop.f32.mrb[0].mxu0
  %197 = vmatprep.mubr.bf16.mxu0 0
  %198 = vmatmul.mubr.bf16.gmra.mrb[0].mxu0 %v112
  %v199 = vpop.f32.mrb[0].mxu0
  %v200 = vadd.f32 %v39, %v199
  %v201 = vpop.f32.mrb[0].mxu0
  %v202 = vpop.f32.mrb[0].mxu0
  %v203 = vadd.f32 %v39, %v202
  %v204 = vpop.f32.mrb[0].mxu0
  %205 = vmatprep.mubr.bf16.mxu0 0
  %206 = vmatmul.mubr.bf16.gmra.mrb[0].mxu0 %v115
  %v207 = vpop.f32.mrb[0].mxu0
  %v208 = vadd.f32 %v39, %v207
  %v209 = vpop.f32.mrb[0].mxu0
  %v210 = vpop.f32.mrb[0].mxu0
  %v211 = vadd.f32 %v39, %v210
  %v212 = vpop.f32.mrb[0].mxu0
  %213 = vdwg.mxu0
  %v214 = vmax.f32 %v152, 0.0
  %v215 = vmax.f32 %v155, 0.0
  %v216 = vmax.f32 %v160, 0.0
  %v217 = vmax.f32 %v163, 0.0
  %v218 = vmax.f32 %v168, 0.0
  %v219 = vmax.f32 %v171, 0.0
  %v220 = vmax.f32 %v176, 0.0
  %v221 = vmax.f32 %v179, 0.0
  %v222 = vmax.f32 %v184, 0.0
  %v223 = vmax.f32 %v187, 0.0
  %v224 = vmax.f32 %v192, 0.0
  %v225 = vmax.f32 %v195, 0.0
  %v226 = vmax.f32 %v200, 0.0
  %v227 = vmax.f32 %v203, 0.0
  %v228 = vmax.f32 %v208, 0.0
  %v229 = vmax.f32 %v211, 0.0
  %v230 = vld [vmem:[%s2 + $0x1] sm:$0x1]
  %v231 = vlaneseq
  %v232 = vshrl.u32 %v231, 7
  %v233 = vsub.s32 0, %v232
  %v234 = vrot.slane %v230, %v233
  %v235 = vmul.f32 %v214, %v234
  %v236 = vmul.f32 %v215, %v234
  %v237 = vmul.f32 %v216, %v234
  %v238 = vmul.f32 %v217, %v234
  %v239 = vmul.f32 %v218, %v234
  %v240 = vmul.f32 %v219, %v234
  %v241 = vmul.f32 %v220, %v234
  %v242 = vmul.f32 %v221, %v234
  %v243 = vmul.f32 %v222, %v234
  %v244 = vmul.f32 %v223, %v234
  %v245 = vmul.f32 %v224, %v234
  %v246 = vmul.f32 %v225, %v234
  %v247 = vmul.f32 %v226, %v234
  %v248 = vmul.f32 %v227, %v234
  %v249 = vmul.f32 %v228, %v234
  %v250 = vmul.f32 %v229, %v234
  %v251 = vld [vmem:[%s2 + $0x2] sm:$0x1]
  %v252 = vlaneseq
  %v253 = vshrl.u32 %v252, 7
  %v254 = vsub.s32 0, %v253
  %v255 = vrot.slane %v251, %v254
  %v256 = vadd.f32 %v235, %v255
  %v257 = vadd.f32 %v236, %v255
  %v258 = vadd.f32 %v237, %v255
  %v259 = vadd.f32 %v238, %v255
  %v260 = vadd.f32 %v239, %v255
  %v261 = vadd.f32 %v240, %v255
  %v262 = vadd.f32 %v241, %v255
  %v263 = vadd.f32 %v242, %v255
  %v264 = vadd.f32 %v243, %v255
  %v265 = vadd.f32 %v244, %v255
  %v266 = vadd.f32 %v245, %v255
  %v267 = vadd.f32 %v246, %v255
  %v268 = vadd.f32 %v247, %v255
  %v269 = vadd.f32 %v248, %v255
  %v270 = vadd.f32 %v249, %v255
  %v271 = vadd.f32 %v250, %v255
  %v272 = vpack.c.bf16 %v257, %v256
  %v273 = vpack.c.bf16 %v259, %v258
  %v274 = vpack.c.bf16 %v261, %v260
  %v275 = vpack.c.bf16 %v263, %v262
  %v276 = vpack.c.bf16 %v265, %v264
  %v277 = vpack.c.bf16 %v267, %v266
  %v278 = vpack.c.bf16 %v269, %v268
  %v279 = vpack.c.bf16 %v271, %v270
  %v288 = vunpack.c.l.b16 %v272
  %v289 = vunpack.c.h.b16 %v272
  %v290 = vunpack.c.l.b16 %v273
  %v291 = vunpack.c.h.b16 %v273
  %v292 = vunpack.c.l.b16 %v274
  %v293 = vunpack.c.h.b16 %v274
  %v294 = vunpack.c.l.b16 %v275
  %v295 = vunpack.c.h.b16 %v275
  %v296 = vunpack.c.l.b16 %v276
  %v297 = vunpack.c.h.b16 %v276
  %v298 = vunpack.c.l.b16 %v277
  %v299 = vunpack.c.h.b16 %v277
  %v300 = vunpack.c.l.b16 %v278
  %v301 = vunpack.c.h.b16 %v278
  %v302 = vunpack.c.l.b16 %v279
  %v303 = vunpack.c.h.b16 %v279
  %v304 = vpack.c.b16 %v288, %v288
  %v305 = vpack.c.b16 %v289, %v289
  %v306 = vpack.c.b16 %v290, %v290
  %v307 = vpack.c.b16 %v291, %v291
  %v308 = vpack.c.b16 %v292, %v292
  %v309 = vpack.c.b16 %v293, %v293
  %v310 = vpack.c.b16 %v294, %v294
  %v311 = vpack.c.b16 %v295, %v295
  %v312 = vpack.c.b16 %v296, %v296
  %v313 = vpack.c.b16 %v297, %v297
  %v314 = vpack.c.b16 %v298, %v298
  %v315 = vpack.c.b16 %v299, %v299
  %v316 = vpack.c.b16 %v300, %v300
  %v317 = vpack.c.b16 %v301, %v301
  %v318 = vpack.c.b16 %v302, %v302
  %v319 = vpack.c.b16 %v303, %v303
  %vm336 = vcmask 60416
  %337 = vst.msk [vmem:[%s3] sm:$0xf] %vm336, %v304
  %338 = vst.msk [vmem:[%s3 + $0x4] sm:$0xf] %vm336, %v305
  %339 = vst.msk [vmem:[%s3 + $0x8] sm:$0xf] %vm336, %v306
  %340 = vst.msk [vmem:[%s3 + $0xc] sm:$0xf] %vm336, %v307
  %341 = vst.msk [vmem:[%s3 + $0x10] sm:$0xf] %vm336, %v308
  %342 = vst.msk [vmem:[%s3 + $0x14] sm:$0xf] %vm336, %v309
  %343 = vst.msk [vmem:[%s3 + $0x18] sm:$0xf] %vm336, %v310
  %344 = vst.msk [vmem:[%s3 + $0x1c] sm:$0xf] %vm336, %v311
  %345 = vst.msk [vmem:[%s3 + $0x20] sm:$0xf] %vm336, %v312
  %346 = vst.msk [vmem:[%s3 + $0x24] sm:$0xf] %vm336, %v313
  %347 = vst.msk [vmem:[%s3 + $0x28] sm:$0xf] %vm336, %v314
  %348 = vst.msk [vmem:[%s3 + $0x2c] sm:$0xf] %vm336, %v315
  %349 = vst.msk [vmem:[%s3 + $0x30] sm:$0xf] %vm336, %v316
  %350 = vst.msk [vmem:[%s3 + $0x34] sm:$0xf] %vm336, %v317
  %351 = vst.msk [vmem:[%s3 + $0x38] sm:$0xf] %vm336, %v318
  %352 = vst.msk [vmem:[%s3 + $0x3c] sm:$0xf] %vm336, %v319
  // Predicated region
  $region14: #{rhnet_forward.7} parent=0 // pred_check
    _
  $region15: #{rhnet_forward.7} parent=0 // pred_check_branch
    %354 = sbr.rel (0) target = $region17
  $region16: #{rhnet_forward.7} parent=0 // pred_region
    _
  $region17: #{rhnet_forward.7} parent=0 // pred_fallthru
    _
  // Predicated region
  $region18: #{rhnet_forward.7} parent=0 // pred_check
    _
  $region19: #{rhnet_forward.7} parent=0 // pred_check_branch
    %356 = sbr.rel (0) target = $region21
  $region20: #{rhnet_forward.7} parent=0 // pred_region
    _
  $region21: #{rhnet_forward.7} parent=0 // pred_fallthru
    _

// kernel: rhnet_forward.8
$region0: #{rhnet_forward.8}
  #allocation0 [shape = 'u32[]', space=smem, size = 0x4, offset = 0x4, fixed_abs, tag = 'smem constant byte address 0x4 - core index']
  #allocation1 [shape = 'u32[144,128]{1,0:T(1,128)}', space=vmem, size = 0x12000, scoped, tag = 'internal scratch']
  %s0 = inlined_call_operand.vmem [shape: bf16[32,80], index: 0, kind: input, shape index: {}]
  %s1 = inlined_call_operand.vmem [shape: bf16[80,8], index: 1, kind: input, shape index: {}]
  %s2 = inlined_call_operand.vmem [shape: f32[3,8], index: 2, kind: input, shape index: {}]
  %s3 = inlined_call_operand.vmem [shape: bf16[32,8], index: 3, kind: output, shape index: {}]
  %s4 = sld [smem:[#allocation0]]
  $region22: #{rhnet_forward.8} parent=0
    _
  %s6 = ssub.s32 1, %s4
  %s7 = scalar_select 0, %s6, %s4
  // Predicated region
  $region2: #{rhnet_forward.8} parent=0 // pred_check
    _
  $region3: #{rhnet_forward.8} parent=0 // pred_check_branch
    %9 = sbr.rel (0) target = $region5
  $region4: #{rhnet_forward.8} parent=0 // pred_region
    _
  $region5: #{rhnet_forward.8} parent=0 // pred_fallthru
    _
  // Predicated region
  $region6: #{rhnet_forward.8} parent=0 // pred_check
    _
  $region7: #{rhnet_forward.8} parent=0 // pred_check_branch
    %11 = sbr.rel (0) target = $region9
  $region8: #{rhnet_forward.8} parent=0 // pred_region
    _
  $region9: #{rhnet_forward.8} parent=0 // pred_fallthru
    _
  // Predicated region
  $region10: #{rhnet_forward.8} parent=0 // pred_check
    _
  $region11: #{rhnet_forward.8} parent=0 // pred_check_branch
    %13 = sbr.rel (0) target = $region13
  $region12: #{rhnet_forward.8} parent=0 // pred_region
    _
  $region13: #{rhnet_forward.8} parent=0 // pred_fallthru
    _
  %v15 = vld [vmem:[%s0] sm:$0xf]
  %v16 = vld [vmem:[%s0 + $0x4] sm:$0xf]
  %v17 = vld [vmem:[%s0 + $0x8] sm:$0xf]
  %v18 = vld [vmem:[%s0 + $0xc] sm:$0xf]
  %v19 = vld [vmem:[%s1] sm:$0xf]
  %v20 = vld [vmem:[%s1 + $0x4] sm:$0xf]
  %v21 = vld [vmem:[%s1 + $0x8] sm:$0xf]
  %v22 = vld [vmem:[%s1 + $0xc] sm:$0xf]
  %v23 = vld [vmem:[%s1 + $0x10] sm:$0xf]
  %v24 = vld [vmem:[%s1 + $0x14] sm:$0xf]
  %v25 = vld [vmem:[%s1 + $0x18] sm:$0xf]
  %v26 = vld [vmem:[%s1 + $0x1c] sm:$0xf]
  %v27 = vld [vmem:[%s1 + $0x20] sm:$0xf]
  %v28 = vld [vmem:[%s1 + $0x24] sm:$0xf]
  %v29 = vld [vmem:[%s2] sm:$0x1]
  %v30 = vlaneseq
  %v31 = vshrl.u32 %v30, 7
  %v32 = vsub.s32 0, %v31
  %v33 = vrot.slane %v29, %v32
  %v38 = vunpack.c.l.b16 %v15
  %v39 = vunpack.c.l.b16 %v16
  %v40 = vunpack.c.l.b16 %v17
  %v41 = vunpack.c.l.b16 %v18
  %v42 = vpack.c.b16 %v39, %v38
  %v43 = vpack.c.b16 %v41, %v40
  %v54 = vunpack.c.l.b16 %v19
  %v55 = vunpack.c.l.b16 %v20
  %v56 = vunpack.c.l.b16 %v21
  %v57 = vunpack.c.l.b16 %v22
  %v58 = vunpack.c.l.b16 %v23
  %v59 = vunpack.c.l.b16 %v24
  %v60 = vunpack.c.l.b16 %v25
  %v61 = vunpack.c.l.b16 %v26
  %v62 = vunpack.c.l.b16 %v27
  %v63 = vunpack.c.l.b16 %v28
  %v64 = vpack.c.b16 %v55, %v54
  %v65 = vpack.c.b16 %v57, %v56
  %v66 = vpack.c.b16 %v59, %v58
  %v67 = vpack.c.b16 %v61, %v60
  %v68 = vpack.c.b16 %v63, %v62
  %vm74 = vcmask 654336
  %v76 = vsel %vm74, %v42, 0
  %v79 = vsel %vm74, %v43, 0
  %81 = vmatprep.subr.bf16.mxu0 0
  %82 = vmatpush1.bf16.msra.mxu0 %v64
  %83 = vmatprep.subr.bf16.mxu0 0
  %84 = vmatpush1.bf16.msra.mxu0 %v65
  %85 = vmatprep.subr.bf16.mxu0 0
  %86 = vmatpush1.bf16.msra.mxu0 %v66
  %87 = vmatprep.subr.bf16.mxu0 0
  %88 = vmatpush1.bf16.msra.mxu0 %v67
  %89 = vmatprep.subr.bf16.mxu0 0
  %90 = vmatpush1.bf16.msra.mxu0 %v68
  %91 = vmatprep.subr.bf16.mxu0 0
  %92 = vmatpush1.bf16.msra.mxu0 0
  %93 = vmatprep.subr.bf16.mxu0 0
  %94 = vmatpush1.bf16.msra.mxu0 0
  %95 = vmatprep.subr.bf16.mxu0 0
  %96 = vmatpush1.bf16.msra.mxu0 0
  %97 = vmatprep.subr.bf16.mxu0 0
  %98 = vmatpush1.bf16.msra.mxu0 0
  %99 = vmatprep.subr.bf16.mxu0 0
  %100 = vmatpush1.bf16.msra.mxu0 0
  %101 = vmatprep.subr.bf16.mxu0 0
  %102 = vmatpush1.bf16.msra.mxu0 0
  %103 = vmatprep.subr.bf16.mxu0 0
  %104 = vmatpush1.bf16.msra.mxu0 0
  %105 = vmatprep.subr.bf16.mxu0 0
  %106 = vmatpush1.bf16.msra.mxu0 0
  %107 = vmatprep.subr.bf16.mxu0 0
  %108 = vmatpush1.bf16.msra.mxu0 0
  %109 = vmatprep.subr.bf16.mxu0 0
  %110 = vmatpush1.bf16.msra.mxu0 0
  %111 = vmatprep.subr.bf16.mxu0 0
  %112 = vmatpush1.bf16.msra.mxu0 0
  %113 = vmatprep.mubr.bf16.mxu0 0
  %114 = vmatmul.mubr.bf16.gmra.mrb[0].mxu0 %v76
  %v115 = vpop.f32.mrb[0].mxu0
  %v116 = vadd.f32 %v33, %v115
  %v117 = vpop.f32.mrb[0].mxu0
  %v118 = vpop.f32.mrb[0].mxu0
  %v119 = vadd.f32 %v33, %v118
  %v120 = vpop.f32.mrb[0].mxu0
  %121 = vmatprep.mubr.bf16.mxu0 0
  %122 = vmatmul.mubr.bf16.gmra.mrb[0].mxu0 %v79
  %v123 = vpop.f32.mrb[0].mxu0
  %v124 = vadd.f32 %v33, %v123
  %v125 = vpop.f32.mrb[0].mxu0
  %v126 = vpop.f32.mrb[0].mxu0
  %v127 = vadd.f32 %v33, %v126
  %v128 = vpop.f32.mrb[0].mxu0
  %129 = vdwg.mxu0
  %v130 = vmax.f32 %v116, 0.0
  %v131 = vmax.f32 %v119, 0.0
  %v132 = vmax.f32 %v124, 0.0
  %v133 = vmax.f32 %v127, 0.0
  %v134 = vld [vmem:[%s2 + $0x1] sm:$0x1]
  %v135 = vlaneseq
  %v136 = vshrl.u32 %v135, 7
  %v137 = vsub.s32 0, %v136
  %v138 = vrot.slane %v134, %v137
  %v139 = vmul.f32 %v130, %v138
  %v140 = vmul.f32 %v131, %v138
  %v141 = vmul.f32 %v132, %v138
  %v142 = vmul.f32 %v133, %v138
  %v143 = vld [vmem:[%s2 + $0x2] sm:$0x1]
  %v144 = vlaneseq
  %v145 = vshrl.u32 %v144, 7
  %v146 = vsub.s32 0, %v145
  %v147 = vrot.slane %v143, %v146
  %v148 = vadd.f32 %v139, %v147
  %v149 = vadd.f32 %v140, %v147
  %v150 = vadd.f32 %v141, %v147
  %v151 = vadd.f32 %v142, %v147
  %v152 = vpack.c.bf16 %v149, %v148
  %v153 = vpack.c.bf16 %v151, %v150
  %v156 = vunpack.c.l.b16 %v152
  %v157 = vunpack.c.h.b16 %v152
  %v158 = vunpack.c.l.b16 %v153
  %v159 = vunpack.c.h.b16 %v153
  %v160 = vpack.c.b16 %v156, %v156
  %v161 = vpack.c.b16 %v157, %v157
  %v162 = vpack.c.b16 %v158, %v158
  %v163 = vpack.c.b16 %v159, %v159
  %vm168 = vcmask 60416
  %169 = vst.msk [vmem:[%s3] sm:$0xf] %vm168, %v160
  %170 = vst.msk [vmem:[%s3 + $0x4] sm:$0xf] %vm168, %v161
  %171 = vst.msk [vmem:[%s3 + $0x8] sm:$0xf] %vm168, %v162
  %172 = vst.msk [vmem:[%s3 + $0xc] sm:$0xf] %vm168, %v163
  // Predicated region
  $region14: #{rhnet_forward.8} parent=0 // pred_check
    _
  $region15: #{rhnet_forward.8} parent=0 // pred_check_branch
    %174 = sbr.rel (0) target = $region17
  $region16: #{rhnet_forward.8} parent=0 // pred_region
    _
  $region17: #{rhnet_forward.8} parent=0 // pred_fallthru
    _
  // Predicated region
  $region18: #{rhnet_forward.8} parent=0 // pred_check
    _
  $region19: #{rhnet_forward.8} parent=0 // pred_check_branch
    %176 = sbr.rel (0) target = $region21
  $region20: #{rhnet_forward.8} parent=0 // pred_region
    _
  $region21: #{rhnet_forward.8} parent=0 // pred_fallthru
    _

// kernel: rhnet_forward.9
$region0: #{rhnet_forward.9}
  #allocation0 [shape = 'u32[]', space=smem, size = 0x4, offset = 0x4, fixed_abs, tag = 'smem constant byte address 0x4 - core index']
  #allocation1 [shape = 'u32[144,128]{1,0:T(1,128)}', space=vmem, size = 0x12000, scoped, tag = 'internal scratch']
  %s0 = inlined_call_operand.vmem [shape: bf16[32,80], index: 0, kind: input, shape index: {}]
  %s1 = inlined_call_operand.vmem [shape: bf16[80,16], index: 1, kind: input, shape index: {}]
  %s2 = inlined_call_operand.vmem [shape: f32[1,16], index: 2, kind: input, shape index: {}]
  %s3 = inlined_call_operand.vmem [shape: bf16[16,8], index: 3, kind: input, shape index: {}]
  %s4 = inlined_call_operand.vmem [shape: f32[1,8], index: 4, kind: input, shape index: {}]
  %s5 = inlined_call_operand.vmem [shape: bf16[32,8], index: 5, kind: input, shape index: {}]
  %s6 = inlined_call_operand.vmem [shape: bf16[32,8], index: 6, kind: output, shape index: {}]
  %s7 = sld [smem:[#allocation0]]
  $region34: #{rhnet_forward.9} parent=0
    _
  %s9 = ssub.s32 1, %s7
  %s10 = scalar_select 0, %s9, %s7
  // Predicated region
  $region2: #{rhnet_forward.9} parent=0 // pred_check
    _
  $region3: #{rhnet_forward.9} parent=0 // pred_check_branch
    %12 = sbr.rel (0) target = $region5
  $region4: #{rhnet_forward.9} parent=0 // pred_region
    _
  $region5: #{rhnet_forward.9} parent=0 // pred_fallthru
    _
  // Predicated region
  $region6: #{rhnet_forward.9} parent=0 // pred_check
    _
  $region7: #{rhnet_forward.9} parent=0 // pred_check_branch
    %14 = sbr.rel (0) target = $region9
  $region8: #{rhnet_forward.9} parent=0 // pred_region
    _
  $region9: #{rhnet_forward.9} parent=0 // pred_fallthru
    _
  // Predicated region
  $region10: #{rhnet_forward.9} parent=0 // pred_check
    _
  $region11: #{rhnet_forward.9} parent=0 // pred_check_branch
    %16 = sbr.rel (0) target = $region13
  $region12: #{rhnet_forward.9} parent=0 // pred_region
    _
  $region13: #{rhnet_forward.9} parent=0 // pred_fallthru
    _
  // Predicated region
  $region14: #{rhnet_forward.9} parent=0 // pred_check
    _
  $region15: #{rhnet_forward.9} parent=0 // pred_check_branch
    %18 = sbr.rel (0) target = $region17
  $region16: #{rhnet_forward.9} parent=0 // pred_region
    _
  $region17: #{rhnet_forward.9} parent=0 // pred_fallthru
    _
  // Predicated region
  $region18: #{rhnet_forward.9} parent=0 // pred_check
    _
  $region19: #{rhnet_forward.9} parent=0 // pred_check_branch
    %20 = sbr.rel (0) target = $region21
  $region20: #{rhnet_forward.9} parent=0 // pred_region
    _
  $region21: #{rhnet_forward.9} parent=0 // pred_fallthru
    _
  // Predicated region
  $region22: #{rhnet_forward.9} parent=0 // pred_check
    _
  $region23: #{rhnet_forward.9} parent=0 // pred_check_branch
    %22 = sbr.rel (0) target = $region25
  $region24: #{rhnet_forward.9} parent=0 // pred_region
    _
  $region25: #{rhnet_forward.9} parent=0 // pred_fallthru
    _
  %v24 = vld [vmem:[%s0] sm:$0xf]
  %v25 = vld [vmem:[%s0 + $0x4] sm:$0xf]
  %v26 = vld [vmem:[%s0 + $0x8] sm:$0xf]
  %v27 = vld [vmem:[%s0 + $0xc] sm:$0xf]
  %v28 = vld [vmem:[%s1] sm:$0xf]
  %v29 = vld [vmem:[%s1 + $0x4] sm:$0xf]
  %v30 = vld [vmem:[%s1 + $0x8] sm:$0xf]
  %v31 = vld [vmem:[%s1 + $0xc] sm:$0xf]
  %v32 = vld [vmem:[%s1 + $0x10] sm:$0xf]
  %v33 = vld [vmem:[%s1 + $0x14] sm:$0xf]
  %v34 = vld [vmem:[%s1 + $0x18] sm:$0xf]
  %v35 = vld [vmem:[%s1 + $0x1c] sm:$0xf]
  %v36 = vld [vmem:[%s1 + $0x20] sm:$0xf]
  %v37 = vld [vmem:[%s1 + $0x24] sm:$0xf]
  %v38 = vld [vmem:[%s2] sm:$0x1]
  %v40 = vlaneseq
  %v41 = vshrl.u32 %v40, 7
  %v42 = vsub.s32 0, %v41
  %v43 = vrot.slane %v38, %v42
  %v49 = vunpack.c.l.b16 %v24
  %v50 = vunpack.c.l.b16 %v25
  %v51 = vunpack.c.l.b16 %v26
  %v52 = vunpack.c.l.b16 %v27
  %v53 = vpack.c.b16 %v50, %v49
  %v54 = vpack.c.b16 %v52, %v51
  %v65 = vunpack.c.l.b16 %v28
  %v66 = vunpack.c.l.b16 %v29
  %v67 = vunpack.c.l.b16 %v30
  %v68 = vunpack.c.l.b16 %v31
  %v69 = vunpack.c.l.b16 %v32
  %v70 = vunpack.c.l.b16 %v33
  %v71 = vunpack.c.l.b16 %v34
  %v72 = vunpack.c.l.b16 %v35
  %v73 = vunpack.c.l.b16 %v36
  %v74 = vunpack.c.l.b16 %v37
  %v75 = vpack.c.b16 %v66, %v65
  %v76 = vpack.c.b16 %v68, %v67
  %v77 = vpack.c.b16 %v70, %v69
  %v78 = vpack.c.b16 %v72, %v71
  %v79 = vpack.c.b16 %v74, %v73
  %vm85 = vcmask 654336
  %v87 = vsel %vm85, %v53, 0
  %v90 = vsel %vm85, %v54, 0
  %92 = vmatprep.subr.bf16.mxu0 0
  %93 = vmatpush1.bf16.msra.mxu0 %v75
  %94 = vmatprep.subr.bf16.mxu0 0
  %95 = vmatpush1.bf16.msra.mxu0 %v76
  %96 = vmatprep.subr.bf16.mxu0 0
  %97 = vmatpush1.bf16.msra.mxu0 %v77
  %98 = vmatprep.subr.bf16.mxu0 0
  %99 = vmatpush1.bf16.msra.mxu0 %v78
  %100 = vmatprep.subr.bf16.mxu0 0
  %101 = vmatpush1.bf16.msra.mxu0 %v79
  %102 = vmatprep.subr.bf16.mxu0 0
  %103 = vmatpush1.bf16.msra.mxu0 0
  %104 = vmatprep.subr.bf16.mxu0 0
  %105 = vmatpush1.bf16.msra.mxu0 0
  %106 = vmatprep.subr.bf16.mxu0 0
  %107 = vmatpush1.bf16.msra.mxu0 0
  %108 = vmatprep.subr.bf16.mxu0 0
  %109 = vmatpush1.bf16.msra.mxu0 0
  %110 = vmatprep.subr.bf16.mxu0 0
  %111 = vmatpush1.bf16.msra.mxu0 0
  %112 = vmatprep.subr.bf16.mxu0 0
  %113 = vmatpush1.bf16.msra.mxu0 0
  %114 = vmatprep.subr.bf16.mxu0 0
  %115 = vmatpush1.bf16.msra.mxu0 0
  %116 = vmatprep.subr.bf16.mxu0 0
  %117 = vmatpush1.bf16.msra.mxu0 0
  %118 = vmatprep.subr.bf16.mxu0 0
  %119 = vmatpush1.bf16.msra.mxu0 0
  %120 = vmatprep.subr.bf16.mxu0 0
  %121 = vmatpush1.bf16.msra.mxu0 0
  %122 = vmatprep.subr.bf16.mxu0 0
  %123 = vmatpush1.bf16.msra.mxu0 0
  %124 = vmatprep.mubr.bf16.mxu0 0
  %125 = vmatmul.mubr.bf16.gmra.mrb[0].mxu0 %v87
  %v126 = vpop.f32.mrb[0].mxu0
  %v127 = vadd.f32 %v43, %v126
  %v128 = vpop.f32.mrb[0].mxu0
  %v129 = vpop.f32.mrb[0].mxu0
  %v130 = vadd.f32 %v43, %v129
  %v131 = vpop.f32.mrb[0].mxu0
  %132 = vmatprep.mubr.bf16.mxu0 0
  %133 = vmatmul.mubr.bf16.gmra.mrb[0].mxu0 %v90
  %v134 = vpop.f32.mrb[0].mxu0
  %v135 = vadd.f32 %v43, %v134
  %v136 = vpop.f32.mrb[0].mxu0
  %v137 = vpop.f32.mrb[0].mxu0
  %v138 = vadd.f32 %v43, %v137
  %v139 = vpop.f32.mrb[0].mxu0
  %140 = vdwg.mxu0
  %v141 = vmax.f32 %v127, 0.0
  %v142 = vmax.f32 %v130, 0.0
  %v143 = vmax.f32 %v135, 0.0
  %v144 = vmax.f32 %v138, 0.0
  %v145 = vpack.c.bf16 %v142, %v141
  %v146 = vpack.c.bf16 %v144, %v143
  %v147 = vld [vmem:[%s3] sm:$0xf]
  %v148 = vld [vmem:[%s3 + $0x4] sm:$0xf]
  %v149 = vld [vmem:[%s4] sm:$0x1]
  %v151 = vlaneseq
  %v152 = vshrl.u32 %v151, 7
  %v153 = vsub.s32 0, %v152
  %v154 = vrot.slane %v149, %v153
  %v158 = vunpack.c.l.b16 %v147
  %v159 = vunpack.c.l.b16 %v148
  %v160 = vpack.c.b16 %v159, %v158
  %vm162 = vcmask 130048
  %v164 = vsel %vm162, %v145, 0
  %v167 = vsel %vm162, %v146, 0
  %169 = vmatprep.subr.bf16.mxu0 0
  %170 = vmatpush1.bf16.msra.mxu0 %v160
  %171 = vmatprep.subr.bf16.mxu0 0
  %172 = vmatpush1.bf16.msra.mxu0 0
  %173 = vmatprep.subr.bf16.mxu0 0
  %174 = vmatpush1.bf16.msra.mxu0 0
  %175 = vmatprep.subr.bf16.mxu0 0
  %176 = vmatpush1.bf16.msra.mxu0 0
  %177 = vmatprep.subr.bf16.mxu0 0
  %178 = vmatpush1.bf16.msra.mxu0 0
  %179 = vmatprep.subr.bf16.mxu0 0
  %180 = vmatpush1.bf16.msra.mxu0 0
  %181 = vmatprep.subr.bf16.mxu0 0
  %182 = vmatpush1.bf16.msra.mxu0 0
  %183 = vmatprep.subr.bf16.mxu0 0
  %184 = vmatpush1.bf16.msra.mxu0 0
  %185 = vmatprep.subr.bf16.mxu0 0
  %186 = vmatpush1.bf16.msra.mxu0 0
  %187 = vmatprep.subr.bf16.mxu0 0
  %188 = vmatpush1.bf16.msra.mxu0 0
  %189 = vmatprep.subr.bf16.mxu0 0
  %190 = vmatpush1.bf16.msra.mxu0 0
  %191 = vmatprep.subr.bf16.mxu0 0
  %192 = vmatpush1.bf16.msra.mxu0 0
  %193 = vmatprep.subr.bf16.mxu0 0
  %194 = vmatpush1.bf16.msra.mxu0 0
  %195 = vmatprep.subr.bf16.mxu0 0
  %196 = vmatpush1.bf16.msra.mxu0 0
  %197 = vmatprep.subr.bf16.mxu0 0
  %198 = vmatpush1.bf16.msra.mxu0 0
  %199 = vmatprep.subr.bf16.mxu0 0
  %200 = vmatpush1.bf16.msra.mxu0 0
  %201 = vmatprep.mubr.bf16.mxu0 0
  %202 = vmatmul.mubr.bf16.gmra.mrb[0].mxu0 %v164
  %v203 = vpop.f32.mrb[0].mxu0
  %v204 = vadd.f32 %v154, %v203
  %v205 = vpop.f32.mrb[0].mxu0
  %v206 = vpop.f32.mrb[0].mxu0
  %v207 = vadd.f32 %v154, %v206
  %v208 = vpop.f32.mrb[0].mxu0
  %209 = vmatprep.mubr.bf16.mxu0 0
  %210 = vmatmul.mubr.bf16.gmra.mrb[0].mxu0 %v167
  %v211 = vpop.f32.mrb[0].mxu0
  %v212 = vadd.f32 %v154, %v211
  %v213 = vpop.f32.mrb[0].mxu0
  %v214 = vpop.f32.mrb[0].mxu0
  %v215 = vadd.f32 %v154, %v214
  %v216 = vpop.f32.mrb[0].mxu0
  %217 = vdwg.mxu0
  %v218 = vmax.f32 %v204, 0.0
  %v219 = vmax.f32 %v207, 0.0
  %v220 = vmax.f32 %v212, 0.0
  %v221 = vmax.f32 %v215, 0.0
  %v222 = vld [vmem:[%s5] sm:$0xf]
  %v223 = vld [vmem:[%s5 + $0x4] sm:$0xf]
  %v224 = vld [vmem:[%s5 + $0x8] sm:$0xf]
  %v225 = vld [vmem:[%s5 + $0xc] sm:$0xf]
  %v226 = vunpack.c.l.bf16 %v222
  %v227 = vunpack.c.l.bf16 %v223
  %v228 = vunpack.c.l.bf16 %v224
  %v229 = vunpack.c.l.bf16 %v225
  %v230 = vadd.f32 %v226, %v218
  %v231 = vadd.f32 %v227, %v219
  %v232 = vadd.f32 %v228, %v220
  %v233 = vadd.f32 %v229, %v221
  %v234 = vpack.c.bf16 %v231, %v230
  %v235 = vpack.c.bf16 %v233, %v232
  %v238 = vunpack.c.l.b16 %v234
  %v239 = vunpack.c.h.b16 %v234
  %v240 = vunpack.c.l.b16 %v235
  %v241 = vunpack.c.h.b16 %v235
  %v242 = vpack.c.b16 %v238, %v238
  %v243 = vpack.c.b16 %v239, %v239
  %v244 = vpack.c.b16 %v240, %v240
  %v245 = vpack.c.b16 %v241, %v241
  %vm250 = vcmask 60416
  %251 = vst.msk [vmem:[%s6] sm:$0xf] %vm250, %v242
  %252 = vst.msk [vmem:[%s6 + $0x4] sm:$0xf] %vm250, %v243
  %253 = vst.msk [vmem:[%s6 + $0x8] sm:$0xf] %vm250, %v244
  %254 = vst.msk [vmem:[%s6 + $0xc] sm:$0xf] %vm250, %v245
  // Predicated region
  $region26: #{rhnet_forward.9} parent=0 // pred_check
    _
  $region27: #{rhnet_forward.9} parent=0 // pred_check_branch
    %256 = sbr.rel (0) target = $region29
  $region28: #{rhnet_forward.9} parent=0 // pred_region
    _
  $region29: #{rhnet_forward.9} parent=0 // pred_fallthru
    _
  // Predicated region
  $region30: #{rhnet_forward.9} parent=0 // pred_check
    _
  $region31: #{rhnet_forward.9} parent=0 // pred_check_branch
    %258 = sbr.rel (0) target = $region33
  $region32: #{rhnet_forward.9} parent=0 // pred_region
    _
  $region33: #{rhnet_forward.9} parent=0 // pred_fallthru
    _

// kernel: rhnet_forward.12
$region0: #{rhnet_forward.12}
  #allocation0 [shape = 'u32[]', space=smem, size = 0x4, offset = 0x4, fixed_abs, tag = 'smem constant byte address 0x4 - core index']
  #allocation1 [shape = 'u32[144,128]{1,0:T(1,128)}', space=vmem, size = 0x12000, scoped, tag = 'internal scratch']
  %s0 = inlined_call_operand.vmem [shape: bf16[16,80], index: 0, kind: input, shape index: {}]
  %s1 = inlined_call_operand.vmem [shape: bf16[80,16], index: 1, kind: input, shape index: {}]
  %s2 = inlined_call_operand.vmem [shape: f32[3,16], index: 2, kind: input, shape index: {}]
  %s3 = inlined_call_operand.vmem [shape: bf16[16,16], index: 3, kind: output, shape index: {}]
  %s4 = sld [smem:[#allocation0]]
  $region22: #{rhnet_forward.12} parent=0
    _
  %s6 = ssub.s32 1, %s4
  %s7 = scalar_select 0, %s6, %s4
  // Predicated region
  $region2: #{rhnet_forward.12} parent=0 // pred_check
    _
  $region3: #{rhnet_forward.12} parent=0 // pred_check_branch
    %9 = sbr.rel (0) target = $region5
  $region4: #{rhnet_forward.12} parent=0 // pred_region
    _
  $region5: #{rhnet_forward.12} parent=0 // pred_fallthru
    _
  // Predicated region
  $region6: #{rhnet_forward.12} parent=0 // pred_check
    _
  $region7: #{rhnet_forward.12} parent=0 // pred_check_branch
    %11 = sbr.rel (0) target = $region9
  $region8: #{rhnet_forward.12} parent=0 // pred_region
    _
  $region9: #{rhnet_forward.12} parent=0 // pred_fallthru
    _
  // Predicated region
  $region10: #{rhnet_forward.12} parent=0 // pred_check
    _
  $region11: #{rhnet_forward.12} parent=0 // pred_check_branch
    %13 = sbr.rel (0) target = $region13
  $region12: #{rhnet_forward.12} parent=0 // pred_region
    _
  $region13: #{rhnet_forward.12} parent=0 // pred_fallthru
    _
  %v15 = vld [vmem:[%s0] sm:$0xf]
  %v16 = vld [vmem:[%s0 + $0x4] sm:$0xf]
  %v17 = vld [vmem:[%s1] sm:$0xf]
  %v18 = vld [vmem:[%s1 + $0x4] sm:$0xf]
  %v19 = vld [vmem:[%s1 + $0x8] sm:$0xf]
  %v20 = vld [vmem:[%s1 + $0xc] sm:$0xf]
  %v21 = vld [vmem:[%s1 + $0x10] sm:$0xf]
  %v22 = vld [vmem:[%s1 + $0x14] sm:$0xf]
  %v23 = vld [vmem:[%s1 + $0x18] sm:$0xf]
  %v24 = vld [vmem:[%s1 + $0x1c] sm:$0xf]
  %v25 = vld [vmem:[%s1 + $0x20] sm:$0xf]
  %v26 = vld [vmem:[%s1 + $0x24] sm:$0xf]
  %v27 = vld [vmem:[%s2] sm:$0x1]
  %v28 = vlaneseq
  %v29 = vshrl.u32 %v28, 7
  %v30 = vsub.s32 0, %v29
  %v31 = vrot.slane %v27, %v30
  %v34 = vunpack.c.l.b16 %v15
  %v35 = vunpack.c.l.b16 %v16
  %v36 = vpack.c.b16 %v35, %v34
  %v47 = vunpack.c.l.b16 %v17
  %v48 = vunpack.c.l.b16 %v18
  %v49 = vunpack.c.l.b16 %v19
  %v50 = vunpack.c.l.b16 %v20
  %v51 = vunpack.c.l.b16 %v21
  %v52 = vunpack.c.l.b16 %v22
  %v53 = vunpack.c.l.b16 %v23
  %v54 = vunpack.c.l.b16 %v24
  %v55 = vunpack.c.l.b16 %v25
  %v56 = vunpack.c.l.b16 %v26
  %v57 = vpack.c.b16 %v48, %v47
  %v58 = vpack.c.b16 %v50, %v49
  %v59 = vpack.c.b16 %v52, %v51
  %v60 = vpack.c.b16 %v54, %v53
  %v61 = vpack.c.b16 %v56, %v55
  %vm67 = vcmask 654336
  %v69 = vsel %vm67, %v36, 0
  %71 = vmatprep.subr.bf16.mxu0 0
  %72 = vmatpush1.bf16.msra.mxu0 %v57
  %73 = vmatprep.subr.bf16.mxu0 0
  %74 = vmatpush1.bf16.msra.mxu0 %v58
  %75 = vmatprep.subr.bf16.mxu0 0
  %76 = vmatpush1.bf16.msra.mxu0 %v59
  %77 = vmatprep.subr.bf16.mxu0 0
  %78 = vmatpush1.bf16.msra.mxu0 %v60
  %79 = vmatprep.subr.bf16.mxu0 0
  %80 = vmatpush1.bf16.msra.mxu0 %v61
  %81 = vmatprep.subr.bf16.mxu0 0
  %82 = vmatpush1.bf16.msra.mxu0 0
  %83 = vmatprep.subr.bf16.mxu0 0
  %84 = vmatpush1.bf16.msra.mxu0 0
  %85 = vmatprep.subr.bf16.mxu0 0
  %86 = vmatpush1.bf16.msra.mxu0 0
  %87 = vmatprep.subr.bf16.mxu0 0
  %88 = vmatpush1.bf16.msra.mxu0 0
  %89 = vmatprep.subr.bf16.mxu0 0
  %90 = vmatpush1.bf16.msra.mxu0 0
  %91 = vmatprep.subr.bf16.mxu0 0
  %92 = vmatpush1.bf16.msra.mxu0 0
  %93 = vmatprep.subr.bf16.mxu0 0
  %94 = vmatpush1.bf16.msra.mxu0 0
  %95 = vmatprep.subr.bf16.mxu0 0
  %96 = vmatpush1.bf16.msra.mxu0 0
  %97 = vmatprep.subr.bf16.mxu0 0
  %98 = vmatpush1.bf16.msra.mxu0 0
  %99 = vmatprep.subr.bf16.mxu0 0
  %100 = vmatpush1.bf16.msra.mxu0 0
  %101 = vmatprep.subr.bf16.mxu0 0
  %102 = vmatpush1.bf16.msra.mxu0 0
  %103 = vmatprep.mubr.bf16.mxu0 0
  %104 = vmatmul.mubr.bf16.gmra.mrb[0].mxu0 %v69
  %v105 = vpop.f32.mrb[0].mxu0
  %v106 = vadd.f32 %v31, %v105
  %v107 = vpop.f32.mrb[0].mxu0
  %v108 = vpop.f32.mrb[0].mxu0
  %v109 = vadd.f32 %v31, %v108
  %v110 = vpop.f32.mrb[0].mxu0
  %111 = vdwg.mxu0
  %v112 = vmax.f32 %v106, 0.0
  %v113 = vmax.f32 %v109, 0.0
  %v114 = vld [vmem:[%s2 + $0x1] sm:$0x1]
  %v115 = vlaneseq
  %v116 = vshrl.u32 %v115, 7
  %v117 = vsub.s32 0, %v116
  %v118 = vrot.slane %v114, %v117
  %v119 = vmul.f32 %v112, %v118
  %v120 = vmul.f32 %v113, %v118
  %v121 = vld [vmem:[%s2 + $0x2] sm:$0x1]
  %v122 = vlaneseq
  %v123 = vshrl.u32 %v122, 7
  %v124 = vsub.s32 0, %v123
  %v125 = vrot.slane %v121, %v124
  %v126 = vadd.f32 %v119, %v125
  %v127 = vadd.f32 %v120, %v125
  %v128 = vpack.c.bf16 %v127, %v126
  %v130 = vunpack.c.l.b16 %v128
  %v131 = vunpack.c.h.b16 %v128
  %v132 = vpack.c.b16 %v130, %v130
  %v133 = vpack.c.b16 %v131, %v131
  %vm136 = vcmask 125952
  %137 = vst.msk [vmem:[%s3] sm:$0xf] %vm136, %v132
  %138 = vst.msk [vmem:[%s3 + $0x4] sm:$0xf] %vm136, %v133
  // Predicated region
  $region14: #{rhnet_forward.12} parent=0 // pred_check
    _
  $region15: #{rhnet_forward.12} parent=0 // pred_check_branch
    %140 = sbr.rel (0) target = $region17
  $region16: #{rhnet_forward.12} parent=0 // pred_region
    _
  $region17: #{rhnet_forward.12} parent=0 // pred_fallthru
    _
  // Predicated region
  $region18: #{rhnet_forward.12} parent=0 // pred_check
    _
  $region19: #{rhnet_forward.12} parent=0 // pred_check_branch
    %142 = sbr.rel (0) target = $region21
  $region20: #{rhnet_forward.12} parent=0 // pred_region
    _
  $region21: #{rhnet_forward.12} parent=0 // pred_fallthru
    _

// kernel: rhnet_forward.10
$region0: #{rhnet_forward.10}
  #allocation0 [shape = 'u32[]', space=smem, size = 0x4, offset = 0x4, fixed_abs, tag = 'smem constant byte address 0x4 - core index']
  #allocation1 [shape = 'u32[144,128]{1,0:T(1,128)}', space=vmem, size = 0x12000, scoped, tag = 'internal scratch']
  %s0 = inlined_call_operand.vmem [shape: bf16[16,80], index: 0, kind: input, shape index: {}]
  %s1 = inlined_call_operand.vmem [shape: bf16[80,8], index: 1, kind: input, shape index: {}]
  %s2 = inlined_call_operand.vmem [shape: f32[3,8], index: 2, kind: input, shape index: {}]
  %s3 = inlined_call_operand.vmem [shape: bf16[16,8], index: 3, kind: output, shape index: {}]
  %s4 = sld [smem:[#allocation0]]
  $region22: #{rhnet_forward.10} parent=0
    _
  %s6 = ssub.s32 1, %s4
  %s7 = scalar_select 0, %s6, %s4
  // Predicated region
  $region2: #{rhnet_forward.10} parent=0 // pred_check
    _
  $region3: #{rhnet_forward.10} parent=0 // pred_check_branch
    %9 = sbr.rel (0) target = $region5
  $region4: #{rhnet_forward.10} parent=0 // pred_region
    _
  $region5: #{rhnet_forward.10} parent=0 // pred_fallthru
    _
  // Predicated region
  $region6: #{rhnet_forward.10} parent=0 // pred_check
    _
  $region7: #{rhnet_forward.10} parent=0 // pred_check_branch
    %11 = sbr.rel (0) target = $region9
  $region8: #{rhnet_forward.10} parent=0 // pred_region
    _
  $region9: #{rhnet_forward.10} parent=0 // pred_fallthru
    _
  // Predicated region
  $region10: #{rhnet_forward.10} parent=0 // pred_check
    _
  $region11: #{rhnet_forward.10} parent=0 // pred_check_branch
    %13 = sbr.rel (0) target = $region13
  $region12: #{rhnet_forward.10} parent=0 // pred_region
    _
  $region13: #{rhnet_forward.10} parent=0 // pred_fallthru
    _
  %v15 = vld [vmem:[%s0] sm:$0xf]
  %v16 = vld [vmem:[%s0 + $0x4] sm:$0xf]
  %v17 = vld [vmem:[%s1] sm:$0xf]
  %v18 = vld [vmem:[%s1 + $0x4] sm:$0xf]
  %v19 = vld [vmem:[%s1 + $0x8] sm:$0xf]
  %v20 = vld [vmem:[%s1 + $0xc] sm:$0xf]
  %v21 = vld [vmem:[%s1 + $0x10] sm:$0xf]
  %v22 = vld [vmem:[%s1 + $0x14] sm:$0xf]
  %v23 = vld [vmem:[%s1 + $0x18] sm:$0xf]
  %v24 = vld [vmem:[%s1 + $0x1c] sm:$0xf]
  %v25 = vld [vmem:[%s1 + $0x20] sm:$0xf]
  %v26 = vld [vmem:[%s1 + $0x24] sm:$0xf]
  %v27 = vld [vmem:[%s2] sm:$0x1]
  %v28 = vlaneseq
  %v29 = vshrl.u32 %v28, 7
  %v30 = vsub.s32 0, %v29
  %v31 = vrot.slane %v27, %v30
  %v34 = vunpack.c.l.b16 %v15
  %v35 = vunpack.c.l.b16 %v16
  %v36 = vpack.c.b16 %v35, %v34
  %v47 = vunpack.c.l.b16 %v17
  %v48 = vunpack.c.l.b16 %v18
  %v49 = vunpack.c.l.b16 %v19
  %v50 = vunpack.c.l.b16 %v20
  %v51 = vunpack.c.l.b16 %v21
  %v52 = vunpack.c.l.b16 %v22
  %v53 = vunpack.c.l.b16 %v23
  %v54 = vunpack.c.l.b16 %v24
  %v55 = vunpack.c.l.b16 %v25
  %v56 = vunpack.c.l.b16 %v26
  %v57 = vpack.c.b16 %v48, %v47
  %v58 = vpack.c.b16 %v50, %v49
  %v59 = vpack.c.b16 %v52, %v51
  %v60 = vpack.c.b16 %v54, %v53
  %v61 = vpack.c.b16 %v56, %v55
  %vm67 = vcmask 654336
  %v69 = vsel %vm67, %v36, 0
  %71 = vmatprep.subr.bf16.mxu0 0
  %72 = vmatpush1.bf16.msra.mxu0 %v57
  %73 = vmatprep.subr.bf16.mxu0 0
  %74 = vmatpush1.bf16.msra.mxu0 %v58
  %75 = vmatprep.subr.bf16.mxu0 0
  %76 = vmatpush1.bf16.msra.mxu0 %v59
  %77 = vmatprep.subr.bf16.mxu0 0
  %78 = vmatpush1.bf16.msra.mxu0 %v60
  %79 = vmatprep.subr.bf16.mxu0 0
  %80 = vmatpush1.bf16.msra.mxu0 %v61
  %81 = vmatprep.subr.bf16.mxu0 0
  %82 = vmatpush1.bf16.msra.mxu0 0
  %83 = vmatprep.subr.bf16.mxu0 0
  %84 = vmatpush1.bf16.msra.mxu0 0
  %85 = vmatprep.subr.bf16.mxu0 0
  %86 = vmatpush1.bf16.msra.mxu0 0
  %87 = vmatprep.subr.bf16.mxu0 0
  %88 = vmatpush1.bf16.msra.mxu0 0
  %89 = vmatprep.subr.bf16.mxu0 0
  %90 = vmatpush1.bf16.msra.mxu0 0
  %91 = vmatprep.subr.bf16.mxu0 0
  %92 = vmatpush1.bf16.msra.mxu0 0
  %93 = vmatprep.subr.bf16.mxu0 0
  %94 = vmatpush1.bf16.msra.mxu0 0
  %95 = vmatprep.subr.bf16.mxu0 0
  %96 = vmatpush1.bf16.msra.mxu0 0
  %97 = vmatprep.subr.bf16.mxu0 0
  %98 = vmatpush1.bf16.msra.mxu0 0
  %99 = vmatprep.subr.bf16.mxu0 0
  %100 = vmatpush1.bf16.msra.mxu0 0
  %101 = vmatprep.subr.bf16.mxu0 0
  %102 = vmatpush1.bf16.msra.mxu0 0
  %103 = vmatprep.mubr.bf16.mxu0 0
  %104 = vmatmul.mubr.bf16.gmra.mrb[0].mxu0 %v69
  %v105 = vpop.f32.mrb[0].mxu0
  %v106 = vadd.f32 %v31, %v105
  %v107 = vpop.f32.mrb[0].mxu0
  %v108 = vpop.f32.mrb[0].mxu0
  %v109 = vadd.f32 %v31, %v108
  %v110 = vpop.f32.mrb[0].mxu0
  %111 = vdwg.mxu0
  %v112 = vmax.f32 %v106, 0.0
  %v113 = vmax.f32 %v109, 0.0
  %v114 = vld [vmem:[%s2 + $0x1] sm:$0x1]
  %v115 = vlaneseq
  %v116 = vshrl.u32 %v115, 7
  %v117 = vsub.s32 0, %v116
  %v118 = vrot.slane %v114, %v117
  %v119 = vmul.f32 %v112, %v118
  %v120 = vmul.f32 %v113, %v118
  %v121 = vld [vmem:[%s2 + $0x2] sm:$0x1]
  %v122 = vlaneseq
  %v123 = vshrl.u32 %v122, 7
  %v124 = vsub.s32 0, %v123
  %v125 = vrot.slane %v121, %v124
  %v126 = vadd.f32 %v119, %v125
  %v127 = vadd.f32 %v120, %v125
  %v128 = vpack.c.bf16 %v127, %v126
  %v130 = vunpack.c.l.b16 %v128
  %v131 = vunpack.c.h.b16 %v128
  %v132 = vpack.c.b16 %v130, %v130
  %v133 = vpack.c.b16 %v131, %v131
  %vm136 = vcmask 60416
  %137 = vst.msk [vmem:[%s3] sm:$0xf] %vm136, %v132
  %138 = vst.msk [vmem:[%s3 + $0x4] sm:$0xf] %vm136, %v133
  // Predicated region
  $region14: #{rhnet_forward.10} parent=0 // pred_check
    _
  $region15: #{rhnet_forward.10} parent=0 // pred_check_branch
    %140 = sbr.rel (0) target = $region17
  $region16: #{rhnet_forward.10} parent=0 // pred_region
    _
  $region17: #{rhnet_forward.10} parent=0 // pred_fallthru
    _
  // Predicated region
  $region18: #{rhnet_forward.10} parent=0 // pred_check
    _
  $region19: #{rhnet_forward.10} parent=0 // pred_check_branch
    %142 = sbr.rel (0) target = $region21
  $region20: #{rhnet_forward.10} parent=0 // pred_region
    _
  $region21: #{rhnet_forward.10} parent=0 // pred_fallthru
    _

// kernel: rhnet_forward.11
$region0: #{rhnet_forward.11}
  #allocation0 [shape = 'u32[]', space=smem, size = 0x4, offset = 0x4, fixed_abs, tag = 'smem constant byte address 0x4 - core index']
  #allocation1 [shape = 'u32[144,128]{1,0:T(1,128)}', space=vmem, size = 0x12000, scoped, tag = 'internal scratch']
  %s0 = inlined_call_operand.vmem [shape: bf16[16,80], index: 0, kind: input, shape index: {}]
  %s1 = inlined_call_operand.vmem [shape: bf16[80,16], index: 1, kind: input, shape index: {}]
  %s2 = inlined_call_operand.vmem [shape: f32[1,16], index: 2, kind: input, shape index: {}]
  %s3 = inlined_call_operand.vmem [shape: bf16[16,8], index: 3, kind: input, shape index: {}]
  %s4 = inlined_call_operand.vmem [shape: f32[1,8], index: 4, kind: input, shape index: {}]
  %s5 = inlined_call_operand.vmem [shape: bf16[16,8], index: 5, kind: input, shape index: {}]
  %s6 = inlined_call_operand.vmem [shape: bf16[16,8], index: 6, kind: output, shape index: {}]
  %s7 = sld [smem:[#allocation0]]
  $region34: #{rhnet_forward.11} parent=0
    _
  %s9 = ssub.s32 1, %s7
  %s10 = scalar_select 0, %s9, %s7
  // Predicated region
  $region2: #{rhnet_forward.11} parent=0 // pred_check
    _
  $region3: #{rhnet_forward.11} parent=0 // pred_check_branch
    %12 = sbr.rel (0) target = $region5
  $region4: #{rhnet_forward.11} parent=0 // pred_region
    _
  $region5: #{rhnet_forward.11} parent=0 // pred_fallthru
    _
  // Predicated region
  $region6: #{rhnet_forward.11} parent=0 // pred_check
    _
  $region7: #{rhnet_forward.11} parent=0 // pred_check_branch
    %14 = sbr.rel (0) target = $region9
  $region8: #{rhnet_forward.11} parent=0 // pred_region
    _
  $region9: #{rhnet_forward.11} parent=0 // pred_fallthru
    _
  // Predicated region
  $region10: #{rhnet_forward.11} parent=0 // pred_check
    _
  $region11: #{rhnet_forward.11} parent=0 // pred_check_branch
    %16 = sbr.rel (0) target = $region13
  $region12: #{rhnet_forward.11} parent=0 // pred_region
    _
  $region13: #{rhnet_forward.11} parent=0 // pred_fallthru
    _
  // Predicated region
  $region14: #{rhnet_forward.11} parent=0 // pred_check
    _
  $region15: #{rhnet_forward.11} parent=0 // pred_check_branch
    %18 = sbr.rel (0) target = $region17
  $region16: #{rhnet_forward.11} parent=0 // pred_region
    _
  $region17: #{rhnet_forward.11} parent=0 // pred_fallthru
    _
  // Predicated region
  $region18: #{rhnet_forward.11} parent=0 // pred_check
    _
  $region19: #{rhnet_forward.11} parent=0 // pred_check_branch
    %20 = sbr.rel (0) target = $region21
  $region20: #{rhnet_forward.11} parent=0 // pred_region
    _
  $region21: #{rhnet_forward.11} parent=0 // pred_fallthru
    _
  // Predicated region
  $region22: #{rhnet_forward.11} parent=0 // pred_check
    _
  $region23: #{rhnet_forward.11} parent=0 // pred_check_branch
    %22 = sbr.rel (0) target = $region25
  $region24: #{rhnet_forward.11} parent=0 // pred_region
    _
  $region25: #{rhnet_forward.11} parent=0 // pred_fallthru
    _
  %v24 = vld [vmem:[%s0] sm:$0xf]
  %v25 = vld [vmem:[%s0 + $0x4] sm:$0xf]
  %v26 = vld [vmem:[%s1] sm:$0xf]
  %v27 = vld [vmem:[%s1 + $0x4] sm:$0xf]
  %v28 = vld [vmem:[%s1 + $0x8] sm:$0xf]
  %v29 = vld [vmem:[%s1 + $0xc] sm:$0xf]
  %v30 = vld [vmem:[%s1 + $0x10] sm:$0xf]
  %v31 = vld [vmem:[%s1 + $0x14] sm:$0xf]
  %v32 = vld [vmem:[%s1 + $0x18] sm:$0xf]
  %v33 = vld [vmem:[%s1 + $0x1c] sm:$0xf]
  %v34 = vld [vmem:[%s1 + $0x20] sm:$0xf]
  %v35 = vld [vmem:[%s1 + $0x24] sm:$0xf]
  %v36 = vld [vmem:[%s2] sm:$0x1]
  %v38 = vlaneseq
  %v39 = vshrl.u32 %v38, 7
  %v40 = vsub.s32 0, %v39
  %v41 = vrot.slane %v36, %v40
  %v45 = vunpack.c.l.b16 %v24
  %v46 = vunpack.c.l.b16 %v25
  %v47 = vpack.c.b16 %v46, %v45
  %v58 = vunpack.c.l.b16 %v26
  %v59 = vunpack.c.l.b16 %v27
  %v60 = vunpack.c.l.b16 %v28
  %v61 = vunpack.c.l.b16 %v29
  %v62 = vunpack.c.l.b16 %v30
  %v63 = vunpack.c.l.b16 %v31
  %v64 = vunpack.c.l.b16 %v32
  %v65 = vunpack.c.l.b16 %v33
  %v66 = vunpack.c.l.b16 %v34
  %v67 = vunpack.c.l.b16 %v35
  %v68 = vpack.c.b16 %v59, %v58
  %v69 = vpack.c.b16 %v61, %v60
  %v70 = vpack.c.b16 %v63, %v62
  %v71 = vpack.c.b16 %v65, %v64
  %v72 = vpack.c.b16 %v67, %v66
  %vm78 = vcmask 654336
  %v80 = vsel %vm78, %v47, 0
  %82 = vmatprep.subr.bf16.mxu0 0
  %83 = vmatpush1.bf16.msra.mxu0 %v68
  %84 = vmatprep.subr.bf16.mxu0 0
  %85 = vmatpush1.bf16.msra.mxu0 %v69
  %86 = vmatprep.subr.bf16.mxu0 0
  %87 = vmatpush1.bf16.msra.mxu0 %v70
  %88 = vmatprep.subr.bf16.mxu0 0
  %89 = vmatpush1.bf16.msra.mxu0 %v71
  %90 = vmatprep.subr.bf16.mxu0 0
  %91 = vmatpush1.bf16.msra.mxu0 %v72
  %92 = vmatprep.subr.bf16.mxu0 0
  %93 = vmatpush1.bf16.msra.mxu0 0
  %94 = vmatprep.subr.bf16.mxu0 0
  %95 = vmatpush1.bf16.msra.mxu0 0
  %96 = vmatprep.subr.bf16.mxu0 0
  %97 = vmatpush1.bf16.msra.mxu0 0
  %98 = vmatprep.subr.bf16.mxu0 0
  %99 = vmatpush1.bf16.msra.mxu0 0
  %100 = vmatprep.subr.bf16.mxu0 0
  %101 = vmatpush1.bf16.msra.mxu0 0
  %102 = vmatprep.subr.bf16.mxu0 0
  %103 = vmatpush1.bf16.msra.mxu0 0
  %104 = vmatprep.subr.bf16.mxu0 0
  %105 = vmatpush1.bf16.msra.mxu0 0
  %106 = vmatprep.subr.bf16.mxu0 0
  %107 = vmatpush1.bf16.msra.mxu0 0
  %108 = vmatprep.subr.bf16.mxu0 0
  %109 = vmatpush1.bf16.msra.mxu0 0
  %110 = vmatprep.subr.bf16.mxu0 0
  %111 = vmatpush1.bf16.msra.mxu0 0
  %112 = vmatprep.subr.bf16.mxu0 0
  %113 = vmatpush1.bf16.msra.mxu0 0
  %114 = vmatprep.mubr.bf16.mxu0 0
  %115 = vmatmul.mubr.bf16.gmra.mrb[0].mxu0 %v80
  %v116 = vpop.f32.mrb[0].mxu0
  %v117 = vadd.f32 %v41, %v116
  %v118 = vpop.f32.mrb[0].mxu0
  %v119 = vpop.f32.mrb[0].mxu0
  %v120 = vadd.f32 %v41, %v119
  %v121 = vpop.f32.mrb[0].mxu0
  %122 = vdwg.mxu0
  %v123 = vmax.f32 %v117, 0.0
  %v124 = vmax.f32 %v120, 0.0
  %v125 = vpack.c.bf16 %v124, %v123
  %v126 = vld [vmem:[%s3] sm:$0xf]
  %v127 = vld [vmem:[%s3 + $0x4] sm:$0xf]
  %v128 = vld [vmem:[%s4] sm:$0x1]
  %v130 = vlaneseq
  %v131 = vshrl.u32 %v130, 7
  %v132 = vsub.s32 0, %v131
  %v133 = vrot.slane %v128, %v132
  %v137 = vunpack.c.l.b16 %v126
  %v138 = vunpack.c.l.b16 %v127
  %v139 = vpack.c.b16 %v138, %v137
  %vm141 = vcmask 130048
  %v143 = vsel %vm141, %v125, 0
  %145 = vmatprep.subr.bf16.mxu0 0
  %146 = vmatpush1.bf16.msra.mxu0 %v139
  %147 = vmatprep.subr.bf16.mxu0 0
  %148 = vmatpush1.bf16.msra.mxu0 0
  %149 = vmatprep.subr.bf16.mxu0 0
  %150 = vmatpush1.bf16.msra.mxu0 0
  %151 = vmatprep.subr.bf16.mxu0 0
  %152 = vmatpush1.bf16.msra.mxu0 0
  %153 = vmatprep.subr.bf16.mxu0 0
  %154 = vmatpush1.bf16.msra.mxu0 0
  %155 = vmatprep.subr.bf16.mxu0 0
  %156 = vmatpush1.bf16.msra.mxu0 0
  %157 = vmatprep.subr.bf16.mxu0 0
  %158 = vmatpush1.bf16.msra.mxu0 0
  %159 = vmatprep.subr.bf16.mxu0 0
  %160 = vmatpush1.bf16.msra.mxu0 0
  %161 = vmatprep.subr.bf16.mxu0 0
  %162 = vmatpush1.bf16.msra.mxu0 0
  %163 = vmatprep.subr.bf16.mxu0 0
  %164 = vmatpush1.bf16.msra.mxu0 0
  %165 = vmatprep.subr.bf16.mxu0 0
  %166 = vmatpush1.bf16.msra.mxu0 0
  %167 = vmatprep.subr.bf16.mxu0 0
  %168 = vmatpush1.bf16.msra.mxu0 0
  %169 = vmatprep.subr.bf16.mxu0 0
  %170 = vmatpush1.bf16.msra.mxu0 0
  %171 = vmatprep.subr.bf16.mxu0 0
  %172 = vmatpush1.bf16.msra.mxu0 0
  %173 = vmatprep.subr.bf16.mxu0 0
  %174 = vmatpush1.bf16.msra.mxu0 0
  %175 = vmatprep.subr.bf16.mxu0 0
  %176 = vmatpush1.bf16.msra.mxu0 0
  %177 = vmatprep.mubr.bf16.mxu0 0
  %178 = vmatmul.mubr.bf16.gmra.mrb[0].mxu0 %v143
  %v179 = vpop.f32.mrb[0].mxu0
  %v180 = vadd.f32 %v133, %v179
  %v181 = vpop.f32.mrb[0].mxu0
  %v182 = vpop.f32.mrb[0].mxu0
  %v183 = vadd.f32 %v133, %v182
  %v184 = vpop.f32.mrb[0].mxu0
  %185 = vdwg.mxu0
  %v186 = vmax.f32 %v180, 0.0
  %v187 = vmax.f32 %v183, 0.0
  %v188 = vld [vmem:[%s5] sm:$0xf]
  %v189 = vld [vmem:[%s5 + $0x4] sm:$0xf]
  %v190 = vunpack.c.l.bf16 %v188
  %v191 = vunpack.c.l.bf16 %v189
  %v192 = vadd.f32 %v190, %v186
  %v193 = vadd.f32 %v191, %v187
  %v194 = vpack.c.bf16 %v193, %v192
  %v196 = vunpack.c.l.b16 %v194
  %v197 = vunpack.c.h.b16 %v194
  %v198 = vpack.c.b16 %v196, %v196
  %v199 = vpack.c.b16 %v197, %v197
  %vm202 = vcmask 60416
  %203 = vst.msk [vmem:[%s6] sm:$0xf] %vm202, %v198
  %204 = vst.msk [vmem:[%s6 + $0x4] sm:$0xf] %vm202, %v199
  // Predicated region
  $region26: #{rhnet_forward.11} parent=0 // pred_check
    _
  $region27: #{rhnet_forward.11} parent=0 // pred_check_branch
    %206 = sbr.rel (0) target = $region29
  $region28: #{rhnet_forward.11} parent=0 // pred_region
    _
  $region29: #{rhnet_forward.11} parent=0 // pred_fallthru
    _
  // Predicated region
  $region30: #{rhnet_forward.11} parent=0 // pred_check
    _
  $region31: #{rhnet_forward.11} parent=0 // pred_check_branch
    %208 = sbr.rel (0) target = $region33
  $region32: #{rhnet_forward.11} parent=0 // pred_region
    _
  $region33: #{rhnet_forward.11} parent=0 // pred_fallthru
    _

// kernel: rhnet_forward.13
$region0: #{rhnet_forward.13}
  #allocation0 [shape = 'u32[]', space=smem, size = 0x4, offset = 0x4, fixed_abs, tag = 'smem constant byte address 0x4 - core index']
  #allocation1 [shape = 'u32[144,128]{1,0:T(1,128)}', space=vmem, size = 0x12000, scoped, tag = 'internal scratch']
  %s0 = inlined_call_operand.vmem [shape: bf16[2,16], index: 0, kind: input, shape index: {}]
  %s1 = inlined_call_operand.vmem [shape: bf16[16,24], index: 1, kind: input, shape index: {}]
  %s2 = inlined_call_operand.vmem [shape: f32[3,24], index: 2, kind: input, shape index: {}]
  %s3 = inlined_call_operand.vmem [shape: bf16[24,24], index: 3, kind: input, shape index: {}]
  %s4 = inlined_call_operand.vmem [shape: f32[3,24], index: 4, kind: input, shape index: {}]
  %s5 = inlined_call_operand.vmem [shape: bf16[24,5], index: 5, kind: input, shape index: {}]
  %s6 = inlined_call_operand.vmem [shape: f32[1,5], index: 6, kind: input, shape index: {}]
  %s7 = inlined_call_operand.hbm [shape: f32[2,5], index: 7, kind: output, shape index: {}]
  %s8 = sld [smem:[#allocation0]]
  $region38: #{rhnet_forward.13} parent=0
    _
  %s10 = ssub.s32 1, %s8
  %s11 = scalar_select 0, %s10, %s8
  $region1: #{rhnet_forward.13} parent=0
    #allocation2 [shape = 'u8[1024]{0}', space=vmem, size = 0x400, scoped, tag = 'output window, operand 0, single buffered']
    #allocation3 [shape = 's32[1]{0}', space=sflag, size = 0x4, scoped, tag = 'scoped memory for rhnet_forward.13']
    %12 = vsyncpa [#allocation3], 0
    // Predicated region
    $region2: #{rhnet_forward.13} parent=1 // pred_check
      _
    $region3: #{rhnet_forward.13} parent=1 // pred_check_branch
      %14 = sbr.rel (0) target = $region5
    $region4: #{rhnet_forward.13} parent=1 // pred_region
      _
    $region5: #{rhnet_forward.13} parent=1 // pred_fallthru
      _
    // Predicated region
    $region6: #{rhnet_forward.13} parent=1 // pred_check
      _
    $region7: #{rhnet_forward.13} parent=1 // pred_check_branch
      %16 = sbr.rel (0) target = $region9
    $region8: #{rhnet_forward.13} parent=1 // pred_region
      _
    $region9: #{rhnet_forward.13} parent=1 // pred_fallthru
      _
    // Predicated region
    $region10: #{rhnet_forward.13} parent=1 // pred_check
      _
    $region11: #{rhnet_forward.13} parent=1 // pred_check_branch
      %18 = sbr.rel (0) target = $region13
    $region12: #{rhnet_forward.13} parent=1 // pred_region
      _
    $region13: #{rhnet_forward.13} parent=1 // pred_fallthru
      _
    // Predicated region
    $region14: #{rhnet_forward.13} parent=1 // pred_check
      _
    $region15: #{rhnet_forward.13} parent=1 // pred_check_branch
      %20 = sbr.rel (0) target = $region17
    $region16: #{rhnet_forward.13} parent=1 // pred_region
      _
    $region17: #{rhnet_forward.13} parent=1 // pred_fallthru
      _
    // Predicated region
    $region18: #{rhnet_forward.13} parent=1 // pred_check
      _
    $region19: #{rhnet_forward.13} parent=1 // pred_check_branch
      %22 = sbr.rel (0) target = $region21
    $region20: #{rhnet_forward.13} parent=1 // pred_region
      _
    $region21: #{rhnet_forward.13} parent=1 // pred_fallthru
      _
    // Predicated region
    $region22: #{rhnet_forward.13} parent=1 // pred_check
      _
    $region23: #{rhnet_forward.13} parent=1 // pred_check_branch
      %24 = sbr.rel (0) target = $region25
    $region24: #{rhnet_forward.13} parent=1 // pred_region
      _
    $region25: #{rhnet_forward.13} parent=1 // pred_fallthru
      _
    // Predicated region
    $region26: #{rhnet_forward.13} parent=1 // pred_check
      _
    $region27: #{rhnet_forward.13} parent=1 // pred_check_branch
      %26 = sbr.rel (0) target = $region29
    $region28: #{rhnet_forward.13} parent=1 // pred_region
      _
    $region29: #{rhnet_forward.13} parent=1 // pred_fallthru
      _
    %v28 = vld [vmem:[%s0] sm:$0x1]
    %v29 = vld [vmem:[%s1] sm:$0xf]
    %v30 = vld [vmem:[%s1 + $0x4] sm:$0xf]
    %v31 = vld [vmem:[%s2] sm:$0x1]
    %v32 = vlaneseq
    %v33 = vshrl.u32 %v32, 7
    %v34 = vsub.s32 0, %v33
    %v35 = vrot.slane %v31, %v34
    %v38 = vunpack.c.l.b16 %v29
    %v39 = vunpack.c.l.b16 %v30
    %v40 = vpack.c.b16 %v39, %v38
    %vm42 = vcmask 130048
    %v44 = vsel %vm42, %v28, 0
    %46 = vmatprep.subr.bf16.mxu0 0
    %47 = vmatpush1.bf16.msra.mxu0 %v40
    %48 = vmatprep.subr.bf16.mxu0 0
    %49 = vmatpush1.bf16.msra.mxu0 0
    %50 = vmatprep.subr.bf16.mxu0 0
    %51 = vmatpush1.bf16.msra.mxu0 0
    %52 = vmatprep.subr.bf16.mxu0 0
    %53 = vmatpush1.bf16.msra.mxu0 0
    %54 = vmatprep.subr.bf16.mxu0 0
    %55 = vmatpush1.bf16.msra.mxu0 0
    %56 = vmatprep.subr.bf16.mxu0 0
    %57 = vmatpush1.bf16.msra.mxu0 0
    %58 = vmatprep.subr.bf16.mxu0 0
    %59 = vmatpush1.bf16.msra.mxu0 0
    %60 = vmatprep.subr.bf16.mxu0 0
    %61 = vmatpush1.bf16.msra.mxu0 0
    %62 = vmatprep.subr.bf16.mxu0 0
    %63 = vmatpush1.bf16.msra.mxu0 0
    %64 = vmatprep.subr.bf16.mxu0 0
    %65 = vmatpush1.bf16.msra.mxu0 0
    %66 = vmatprep.subr.bf16.mxu0 0
    %67 = vmatpush1.bf16.msra.mxu0 0
    %68 = vmatprep.subr.bf16.mxu0 0
    %69 = vmatpush1.bf16.msra.mxu0 0
    %70 = vmatprep.subr.bf16.mxu0 0
    %71 = vmatpush1.bf16.msra.mxu0 0
    %72 = vmatprep.subr.bf16.mxu0 0
    %73 = vmatpush1.bf16.msra.mxu0 0
    %74 = vmatprep.subr.bf16.mxu0 0
    %75 = vmatpush1.bf16.msra.mxu0 0
    %76 = vmatprep.subr.bf16.mxu0 0
    %77 = vmatpush1.bf16.msra.mxu0 0
    %78 = vmatprep.mubr.bf16.mxu0 0
    %79 = vmatmul.mubr.bf16.gmra.mrb[0].mxu0 %v44
    %v80 = vpop.f32.mrb[0].mxu0
    %v81 = vadd.f32 %v35, %v80
    %v82 = vpop.f32.mrb[0].mxu0
    %v83 = vpop.f32.mrb[0].mxu0
    %v84 = vpop.f32.mrb[0].mxu0
    %85 = vdwg.mxu0
    %v86 = vmax.f32 %v81, 0.0
    %v87 = vld [vmem:[%s2 + $0x1] sm:$0x1]
    %v88 = vlaneseq
    %v89 = vshrl.u32 %v88, 7
    %v90 = vsub.s32 0, %v89
    %v91 = vrot.slane %v87, %v90
    %v92 = vmul.f32 %v86, %v91
    %v93 = vld [vmem:[%s2 + $0x2] sm:$0x1]
    %v94 = vlaneseq
    %v95 = vshrl.u32 %v94, 7
    %v96 = vsub.s32 0, %v95
    %v97 = vrot.slane %v93, %v96
    %v98 = vadd.f32 %v92, %v97
    %v99 = vpack.c.bf16 %v98, %v98
    %v100 = vld [vmem:[%s3] sm:$0xf]
    %v101 = vld [vmem:[%s3 + $0x4] sm:$0xf]
    %v102 = vld [vmem:[%s3 + $0x8] sm:$0xf]
    %v103 = vld [vmem:[%s4] sm:$0x1]
    %v104 = vlaneseq
    %v105 = vshrl.u32 %v104, 7
    %v106 = vsub.s32 0, %v105
    %v107 = vrot.slane %v103, %v106
    %v111 = vunpack.c.l.b16 %v100
    %v112 = vunpack.c.l.b16 %v101
    %v113 = vunpack.c.l.b16 %v102
    %v114 = vpack.c.b16 %v112, %v111
    %v115 = vpack.c.b16 %v113, %v113
    %vm117 = vcmask 195584
    %v119 = vsel %vm117, %v99, 0
    %vm121 = vcmask 1043456
    %v123 = vsel %vm121, %v115, 0
    %125 = vmatprep.subr.bf16.mxu0 0
    %126 = vmatpush1.bf16.msra.mxu0 %v114
    %127 = vmatprep.subr.bf16.mxu0 0
    %128 = vmatpush1.bf16.msra.mxu0 %v123
    %129 = vmatprep.subr.bf16.mxu0 0
    %130 = vmatpush1.bf16.msra.mxu0 0
    %131 = vmatprep.subr.bf16.mxu0 0
    %132 = vmatpush1.bf16.msra.mxu0 0
    %133 = vmatprep.subr.bf16.mxu0 0
    %134 = vmatpush1.bf16.msra.mxu0 0
    %135 = vmatprep.subr.bf16.mxu0 0
    %136 = vmatpush1.bf16.msra.mxu0 0
    %137 = vmatprep.subr.bf16.mxu0 0
    %138 = vmatpush1.bf16.msra.mxu0 0
    %139 = vmatprep.subr.bf16.mxu0 0
    %140 = vmatpush1.bf16.msra.mxu0 0
    %141 = vmatprep.subr.bf16.mxu0 0
    %142 = vmatpush1.bf16.msra.mxu0 0
    %143 = vmatprep.subr.bf16.mxu0 0
    %144 = vmatpush1.bf16.msra.mxu0 0
    %145 = vmatprep.subr.bf16.mxu0 0
    %146 = vmatpush1.bf16.msra.mxu0 0
    %147 = vmatprep.subr.bf16.mxu0 0
    %148 = vmatpush1.bf16.msra.mxu0 0
    %149 = vmatprep.subr.bf16.mxu0 0
    %150 = vmatpush1.bf16.msra.mxu0 0
    %151 = vmatprep.subr.bf16.mxu0 0
    %152 = vmatpush1.bf16.msra.mxu0 0
    %153 = vmatprep.subr.bf16.mxu0 0
    %154 = vmatpush1.bf16.msra.mxu0 0
    %155 = vmatprep.subr.bf16.mxu0 0
    %156 = vmatpush1.bf16.msra.mxu0 0
    %157 = vmatprep.mubr.bf16.mxu0 0
    %158 = vmatmul.mubr.bf16.gmra.mrb[0].mxu0 %v119
    %v159 = vpop.f32.mrb[0].mxu0
    %v160 = vadd.f32 %v107, %v159
    %v161 = vpop.f32.mrb[0].mxu0
    %v162 = vpop.f32.mrb[0].mxu0
    %v163 = vpop.f32.mrb[0].mxu0
    %164 = vdwg.mxu0
    %v165 = vmax.f32 %v160, 0.0
    %v166 = vld [vmem:[%s4 + $0x1] sm:$0x1]
    %v167 = vlaneseq
    %v168 = vshrl.u32 %v167, 7
    %v169 = vsub.s32 0, %v168
    %v170 = vrot.slane %v166, %v169
    %v171 = vmul.f32 %v165, %v170
    %v172 = vld [vmem:[%s4 + $0x2] sm:$0x1]
    %v173 = vlaneseq
    %v174 = vshrl.u32 %v173, 7
    %v175 = vsub.s32 0, %v174
    %v176 = vrot.slane %v172, %v175
    %v177 = vadd.f32 %v171, %v176
    %v178 = vpack.c.bf16 %v177, %v177
    %v179 = vld [vmem:[%s5] sm:$0xf]
    %v180 = vld [vmem:[%s5 + $0x4] sm:$0xf]
    %v181 = vld [vmem:[%s5 + $0x8] sm:$0xf]
    %v182 = vld [vmem:[%s6] sm:$0x1]
    %v184 = vlaneseq
    %v185 = vshrl.u32 %v184, 7
    %v186 = vsub.s32 0, %v185
    %v187 = vrot.slane %v182, %v186
    %v192 = vunpack.c.l.b16 %v179
    %v193 = vunpack.c.l.b16 %v180
    %v194 = vunpack.c.l.b16 %v181
    %v195 = vpack.c.b16 %v193, %v192
    %v196 = vpack.c.b16 %v194, %v194
    %v199 = vsel %vm117, %v178, 0
    %v202 = vsel %vm121, %v196, 0
    %204 = vmatprep.subr.bf16.mxu0 0
    %205 = vmatpush1.bf16.msra.mxu0 %v195
    %206 = vmatprep.subr.bf16.mxu0 0
    %207 = vmatpush1.bf16.msra.mxu0 %v202
    %208 = vmatprep.subr.bf16.mxu0 0
    %209 = vmatpush1.bf16.msra.mxu0 0
    %210 = vmatprep.subr.bf16.mxu0 0
    %211 = vmatpush1.bf16.msra.mxu0 0
    %212 = vmatprep.subr.bf16.mxu0 0
    %213 = vmatpush1.bf16.msra.mxu0 0
    %214 = vmatprep.subr.bf16.mxu0 0
    %215 = vmatpush1.bf16.msra.mxu0 0
    %216 = vmatprep.subr.bf16.mxu0 0
    %217 = vmatpush1.bf16.msra.mxu0 0
    %218 = vmatprep.subr.bf16.mxu0 0
    %219 = vmatpush1.bf16.msra.mxu0 0
    %220 = vmatprep.subr.bf16.mxu0 0
    %221 = vmatpush1.bf16.msra.mxu0 0
    %222 = vmatprep.subr.bf16.mxu0 0
    %223 = vmatpush1.bf16.msra.mxu0 0
    %224 = vmatprep.subr.bf16.mxu0 0
    %225 = vmatpush1.bf16.msra.mxu0 0
    %226 = vmatprep.subr.bf16.mxu0 0
    %227 = vmatpush1.bf16.msra.mxu0 0
    %228 = vmatprep.subr.bf16.mxu0 0
    %229 = vmatpush1.bf16.msra.mxu0 0
    %230 = vmatprep.subr.bf16.mxu0 0
    %231 = vmatpush1.bf16.msra.mxu0 0
    %232 = vmatprep.subr.bf16.mxu0 0
    %233 = vmatpush1.bf16.msra.mxu0 0
    %234 = vmatprep.subr.bf16.mxu0 0
    %235 = vmatpush1.bf16.msra.mxu0 0
    %236 = vmatprep.mubr.bf16.mxu0 0
    %237 = vmatmul.mubr.bf16.gmra.mrb[0].mxu0 %v199
    %v238 = vpop.f32.mrb[0].mxu0
    %v239 = vadd.f32 %v187, %v238
    %v240 = vpop.f32.mrb[0].mxu0
    %v241 = vpop.f32.mrb[0].mxu0
    %v242 = vpop.f32.mrb[0].mxu0
    %243 = vdwg.mxu0
    %vm244 = vcmask 33792
    %245 = vst.msk [vmem:[#allocation2] sm:$0x3] %vm244, %v239
    // Predicated region
    $region30: #{rhnet_forward.13} parent=1 // pred_check
      _
    $region31: #{rhnet_forward.13} parent=1 // pred_check_branch
      %247 = sbr.rel (0) target = $region33
    $region32: #{rhnet_forward.13} parent=1 // pred_region
      %s249 = ssub.s32 32, 32
      %250 = vsyncadd [#allocation3], %s249
      %s252 = sshll.u32 [#allocation2], 4
      %s253 = int_to_ptr.vmem [resolvable:$true] %s252
      %255 = dma.vmem_to_hbm [thread:$0]  %s253, 32, %s7, [#allocation3]
    $region33: #{rhnet_forward.13} parent=1 // pred_fallthru
      _
    // Predicated region
    $region34: #{rhnet_forward.13} parent=1 // pred_check
      _
    $region35: #{rhnet_forward.13} parent=1 // pred_check_branch
      %257 = sbr.rel (0) target = $region37
    $region36: #{rhnet_forward.13} parent=1 // pred_region
      %258 = dma.done [#allocation3], 32
    $region37: #{rhnet_forward.13} parent=1 // pred_fallthru
      _
    %259 = vsyncpa [#allocation3], 1

</llo_original>
